<compile_context>
chip_gen: v7x
topology: tpu7x:2x2x1
jax: 0.10.0
libtpu: 0.0.40
codegen_flags: <defaults>
</compile_context>

<pallas_src>
import math
import functools

import jax
import jax.numpy as jnp
from jax.experimental import pallas as pl
from jax.experimental.pallas import tpu as pltpu


# ------------------------------ fused kernel ------------------------------- #

def _decoder_layer_kernel(
    x_ref, enc_ref,
    w_qv1_ref, w_k1_ref, w_o1_ref,       # self-attn packed weights (bf16)
    w_q2_ref, w_kv2_ref, w_o2_ref,       # cross-attn packed weights (bf16)
    w_f1_ref, w_f2_ref,                  # FFN weights (bf16)
    vec_ref,                             # packed bias / gamma / beta slab (f32)
    o_ref,
    *, num_heads, eps,
):
    f32, bf16 = jnp.float32, jnp.bfloat16
    L, E = x_ref.shape
    S = enc_ref.shape[0]
    Hd = w_f1_ref.shape[1]
    d = E // num_heads
    E2 = 2 * E

    # ----- packed small-vector slab: static ref views, one DMA for all of them -----
    b_qv1 = vec_ref[0:1, :E2]
    b_k1 = vec_ref[1:2, :E2]
    b_o1 = vec_ref[2:3, :E]
    g1 = vec_ref[3:4, :E]
    bt1 = vec_ref[4:5, :E]
    b_q2 = vec_ref[5:6, :E2]
    b_kv2 = vec_ref[6:7, :E2]
    b_o2 = vec_ref[7:8, :E]
    g2 = vec_ref[8:9, :E]
    bt2 = vec_ref[9:10, :E]
    b_f1 = vec_ref[10:11, :Hd]
    b_f2 = vec_ref[11:12, :E]
    g3 = vec_ref[12:13, :E]
    bt3 = vec_ref[13:14, :E]

    # ----- per-head lane masks over the packed 2E-wide slabs (built once, reused) ---
    col = jax.lax.broadcasted_iota(jnp.int32, (1, E2), 1)
    qk_mask = [jnp.logical_and(col >= h * d, col < (h + 1) * d)
               for h in range(num_heads)]
    v_mask = [jnp.logical_and(col >= E + h * d, col < E + (h + 1) * d)
              for h in range(num_heads)]

    def layer_norm(y, g, b):
        # one-pass variance: two independent last-axis reductions (overlap on XLU)
        mu = jnp.mean(y, axis=-1, keepdims=True)
        ms = jnp.mean(y * y, axis=-1, keepdims=True)
        inv = jax.lax.rsqrt(ms - mu * mu + eps)
        return (y - mu) * inv * g + b

    def softmax(s):                      # rows x keys, f32
        m = jnp.max(s, axis=-1, keepdims=True)
        p = jnp.exp(s - m)
        return p * pl.reciprocal(jnp.sum(p, axis=-1, keepdims=True), approx=True)

    def mha(q_slab, k_slab, v_slab, wo_ref, bo):
        # q_slab: (Lq, 2E) with Q head-h in cols [h*d, (h+1)*d)            (bf16)
        # k_slab: (Lk, 2E) with K head-h in cols [h*d, (h+1)*d)            (bf16)
        # v_slab: (Lk, 2E) with V head-h in cols [E + h*d, E + (h+1)*d)    (bf16)
        acc = jnp.zeros((q_slab.shape[0], E2), f32)
        for h in range(num_heads):       # short static loop, fully unrolled
            qm = jnp.where(qk_mask[h], q_slab, 0)
            km = jnp.where(qk_mask[h], k_slab, 0)
            s = jax.lax.dot_general(qm, km, (((1,), (1,)), ((), ())),
                                    preferred_element_type=f32)      # (Lq, Lk)
            p = softmax(s).astype(bf16)
            vm = jnp.where(v_mask[h], v_slab, 0)
            acc = acc + jnp.dot(p, vm, preferred_element_type=f32)   # lands in V cols
        # out-proj weight has zero rows [0, E): consumes the 2E-wide slab directly
        return jnp.dot(acc.astype(bf16), wo_ref[...],
                       preferred_element_type=f32) + bo

    x = x_ref[...]                       # (L, E) f32
    xb = x.astype(bf16)

    # ----- self-attention + add & norm -----
    qv = jnp.dot(xb, w_qv1_ref[...], preferred_element_type=f32) + b_qv1   # [Q|V]
    kk = jnp.dot(xb, w_k1_ref[...], preferred_element_type=f32) + b_k1     # [K|0]
    qvb = qv.astype(bf16)
    sa = mha(qvb, kk.astype(bf16), qvb, w_o1_ref, b_o1)
    x = layer_norm(x + sa, g1, bt1)

    # ----- cross-attention + add & norm -----
    xb = x.astype(bf16)
    eb = enc_ref[...].astype(bf16)
    q2 = jnp.dot(xb, w_q2_ref[...], preferred_element_type=f32) + b_q2     # [Q|0]
    kv = jnp.dot(eb, w_kv2_ref[...], preferred_element_type=f32) + b_kv2   # [K|V]
    kvb = kv.astype(bf16)
    ca = mha(q2.astype(bf16), kvb, kvb, w_o2_ref, b_o2)
    x = layer_norm(x + ca, g2, bt2)

    # ----- FFN + add & norm -----
    h1 = jnp.dot(x.astype(bf16), w_f1_ref[...], preferred_element_type=f32) + b_f1
    h1 = jnp.where(h1 >= 0, h1, 0.01 * h1)                                 # LeakyReLU
    f = jnp.dot(h1.astype(bf16), w_f2_ref[...], preferred_element_type=f32) + b_f2
    f = jnp.maximum(f, 0.0)                                                # ReLU
    o_ref[...] = layer_norm(x + f, g3, bt3)


# --------------------------- one-time parameter prep ------------------------ #

def prepare_params(params, embed_dim, num_heads, hidden_dim):
    """Transpose / scale-fold / pack weights ONCE into kernel-ready layout."""
    E, Hd = embed_dim, hidden_dim
    d = E // num_heads
    scale = 1.0 / math.sqrt(d)
    f32, bf16 = jnp.float32, jnp.bfloat16

    w_in1, b_in1, w_out1, b_out1 = params["self_attn"]
    w_in2, b_in2, w_out2, b_out2 = params["cross_attn"]
    zE = jnp.zeros((E, E), f32)
    zv = jnp.zeros((E,), f32)

    # self-attn: slab A = [Q(scaled) | V], slab B = [K | 0]
    w_qv1 = jnp.concatenate([(w_in1[:E] * scale).T, w_in1[2 * E:].T], axis=1)
    b_qv1 = jnp.concatenate([b_in1[:E] * scale, b_in1[2 * E:]])
    w_k1 = jnp.concatenate([w_in1[E:2 * E].T, zE], axis=1)
    b_k1 = jnp.concatenate([b_in1[E:2 * E], zv])
    w_o1 = jnp.concatenate([zE, w_out1.T], axis=0)            # rows [E,2E) are real

    # cross-attn: Q slab = [Q(scaled) | 0] from x, KV slab = [K | V] from encoder
    w_q2 = jnp.concatenate([(w_in2[:E] * scale).T, zE], axis=1)
    b_q2 = jnp.concatenate([b_in2[:E] * scale, zv])
    w_kv2 = jnp.concatenate([w_in2[E:2 * E].T, w_in2[2 * E:].T], axis=1)
    b_kv2 = jnp.concatenate([b_in2[E:2 * E], b_in2[2 * E:]])
    w_o2 = jnp.concatenate([zE, w_out2.T], axis=0)

    w_f1 = params["ffn_w1"].T                                  # (E, Hd)
    w_f2 = params["ffn_w2"].T                                  # (Hd, E)

    # pack every small vector into one (rows, vec_w) f32 slab: one DMA instead of 14
    vec_w = ((max(2 * E, Hd, E) + 127) // 128) * 128

    def row(v):
        v = v.reshape(1, -1).astype(f32)
        return jnp.pad(v, ((0, 0), (0, vec_w - v.shape[1])))

    rows = [b_qv1, b_k1, b_out1, params["ln1_g"], params["ln1_b"],
            b_q2, b_kv2, b_out2, params["ln2_g"], params["ln2_b"],
            params["ffn_b1"], params["ffn_b2"], params["ln3_g"], params["ln3_b"]]
    vecs = jnp.concatenate([row(v) for v in rows], axis=0)
    pad_rows = -len(rows) % 8
    if pad_rows:
        vecs = jnp.pad(vecs, ((0, pad_rows), (0, 0)))

    weights = tuple(w.astype(bf16) for w in
                    (w_qv1, w_k1, w_o1, w_q2, w_kv2, w_o2, w_f1, w_f2))
    return weights + (vecs,)


# ------------------------------ module wrapper ------------------------------ #

def decoder_layer(x, encoder_output, prepped, num_heads):
    # x: (L, N, E); encoder_output: (S, N, E)   (PyTorch seq-first convention)
    L, N, E = x.shape
    S = encoder_output.shape[0]
    (w_qv1, w_k1, w_o1, w_q2, w_kv2, w_o2, w_f1, w_f2, vecs) = prepped
    Hd = w_f1.shape[1]

    # batch-major token slabs: per-batch rows are contiguous, (8,128)-safe blocks
    x2d = jnp.transpose(x, (1, 0, 2)).reshape(N * L, E)
    enc2d = jnp.transpose(encoder_output, (1, 0, 2)).reshape(N * S, E)

    M, Ms = N * L, N * S
    flops = int(
        8 * M * E * E                       # self [Q|V] + [K|0] projections
        + N * num_heads * 8 * L * L * E     # self scores + P@V (2E-wide contraction)
        + 4 * M * E * E                     # self out-projection
        + 4 * M * E * E + 4 * Ms * E * E    # cross Q and packed K/V projections
        + N * num_heads * 8 * L * S * E     # cross scores + P@V
        + 4 * M * E * E                     # cross out-projection
        + 2 * M * E * Hd + 2 * M * Hd * E   # FFN
    )
    transcendentals = int(N * num_heads * (L * L + L * S) + 9 * M)
    args = (x2d, enc2d, w_qv1, w_k1, w_o1, w_q2, w_kv2, w_o2, w_f1, w_f2, vecs)
    bytes_accessed = int(sum(a.size * a.dtype.itemsize for a in args) + M * E * 4)

    kernel = functools.partial(_decoder_layer_kernel, num_heads=num_heads, eps=1e-5)
    full = lambda shape: pl.BlockSpec(shape, lambda n: (0, 0))   # resident weights

    out2d = pl.pallas_call(
        kernel,
        out_shape=jax.ShapeDtypeStruct((M, E), jnp.float32),
        grid=(N,),
        in_specs=[
            pl.BlockSpec((L, E), lambda n: (n, 0)),     # x: one batch per step
            pl.BlockSpec((S, E), lambda n: (n, 0)),     # enc: one batch per step
            full(w_qv1.shape), full(w_k1.shape), full(w_o1.shape),
            full(w_q2.shape), full(w_kv2.shape), full(w_o2.shape),
            full(w_f1.shape), full(w_f2.shape), full(vecs.shape),
        ],
        out_specs=pl.BlockSpec((L, E), lambda n: (n, 0)),
        compiler_params=pltpu.CompilerParams(
            dimension_semantics=("parallel",),          # megacore shard on v7x
            vmem_limit_bytes=32 * 1024 * 1024),
        cost_estimate=pl.CostEstimate(flops=flops,
                                      transcendentals=transcendentals,
                                      bytes_accessed=bytes_accessed),
    )(*args)

    return out2d.reshape(N, L, E).transpose(1, 0, 2)    # back to (L, N, E)


decoder_layer_jit = jax.jit(decoder_layer, static_argnums=(3,))


# ----------------------------- pure-JAX reference --------------------------- #

def _ref_mha(query, key, value, p, num_heads):
    L, N, E = query.shape
    S = key.shape[0]
    d = E // num_heads
    w_in, b_in, w_out, b_out = p
    hp = jax.lax.Precision.HIGHEST
    q = jnp.dot(query.reshape(L * N, E), w_in[:E].T, precision=hp) + b_in[:E]
    k = jnp.dot(key.reshape(S * N, E), w_in[E:2 * E].T, precision=hp) + b_in[E:2 * E]
    v = jnp.dot(value.reshape(S * N, E), w_in[2 * E:].T, precision=hp) + b_in[2 * E:]
    q = q.reshape(L, N, num_heads, d).transpose(1, 2, 0, 3)
    k = k.reshape(S, N, num_heads, d).transpose(1, 2, 0, 3)
    v = v.reshape(S, N, num_heads, d).transpose(1, 2, 0, 3)
    s = jnp.einsum("bhld,bhsd->bhls", q, k, precision=hp) / math.sqrt(d)
    p_ = jax.nn.softmax(s, axis=-1)
    o = jnp.einsum("bhls,bhsd->bhld", p_, v, precision=hp)
    o = o.transpose(2, 0, 1, 3).reshape(L * N, E)
    return (jnp.dot(o, w_out.T, precision=hp) + b_out).reshape(L, N, E)


def _ref_ln(x, g, b, eps=1e-5):
    m = jnp.mean(x, axis=-1, keepdims=True)
    v = jnp.mean(jnp.square(x - m), axis=-1, keepdims=True)
    return (x - m) * jax.lax.rsqrt(v + eps) * g + b


def _ref_decoder(x, enc, params, num_heads):
    hp = jax.lax.Precision.HIGHEST
    x = _ref_ln(x + _ref_mha(x, x, x, params["self_attn"], num_heads),
                params["ln1_g"], params["ln1_b"])
    x = _ref_ln(x + _ref_mha(x, enc, enc, params["cross_attn"], num_heads),
                params["ln2_g"], params["ln2_b"])
    h = jnp.dot(x, params["ffn_w1"].T, precision=hp) + params["ffn_b1"]
    h = jnp.where(h >= 0, h, 0.01 * h)
    f = jnp.maximum(jnp.dot(h, params["ffn_w2"].T, precision=hp) + params["ffn_b2"], 0.0)
    return _ref_ln(x + f, params["ln3_g"], params["ln3_b"])


# ----------------------------------- main ----------------------------------- #

def _init_params(key, embed_dim, num_heads, hidden_dim):
    keys = jax.random.split(key, 16)

    def w(k, shape, scale=0.1):
        return (scale * jax.random.normal(k, shape)).astype(jnp.float32)

    def attn_params(k0, k1, k2, k3):
        return (w(k0, (3 * embed_dim, embed_dim)),   # in_proj_weight
                w(k1, (3 * embed_dim,)),             # in_proj_bias
                w(k2, (embed_dim, embed_dim)),       # out_proj.weight
                w(k3, (embed_dim,)))                 # out_proj.bias

    return {
        "self_attn": attn_params(*keys[0:4]),
        "cross_attn": attn_params(*keys[4:8]),
        "ffn_w1": w(keys[8], (hidden_dim, embed_dim)),
        "ffn_b1": w(keys[9], (hidden_dim,)),
        "ffn_w2": w(keys[10], (embed_dim, hidden_dim)),
        "ffn_b2": w(keys[11], (embed_dim,)),
        "ln1_g": 1.0 + w(keys[12], (embed_dim,)), "ln1_b": w(keys[12], (embed_dim,)),
        "ln2_g": 1.0 + w(keys[13], (embed_dim,)), "ln2_b": w(keys[13], (embed_dim,)),
        "ln3_g": 1.0 + w(keys[14], (embed_dim,)), "ln3_b": w(keys[14], (embed_dim,)),
    }


if __name__ == "__main__":
    embed_dim, num_heads, hidden_dim = 32, 4, 64
    tgt_len, src_len, batch = 8, 8, 2

    root = jax.random.PRNGKey(0)
    k_p, k_x, k_e = jax.random.split(root, 3)
    params = _init_params(k_p, embed_dim, num_heads, hidden_dim)
    x = jax.random.normal(k_x, (tgt_len, batch, embed_dim), dtype=jnp.float32)
    enc = jax.random.normal(k_e, (src_len, batch, embed_dim), dtype=jnp.float32)

    prepped = prepare_params(params, embed_dim, num_heads, hidden_dim)
    prepped = jax.block_until_ready(prepped)

    out = decoder_layer_jit(x, enc, prepped, num_heads)
    out = jax.block_until_ready(out)

    ref = jax.block_until_ready(_ref_decoder(x, enc, params, num_heads))
    assert out.shape == (tgt_len, batch, embed_dim), out.shape
    # bf16 MXU operands with f32 accumulation vs f32 HIGHEST reference
    assert jnp.allclose(out, ref, atol=2e-2, rtol=2e-2), (
        float(jnp.max(jnp.abs(out - ref))))

    print("KERNEL_OK")
</pallas_src>

<mosaic_0001>
module attributes {stable_mosaic.version = 11 : i64} {
  func.func @_decoder_layer_kernel(%arg0: i32, %arg1: memref<8x32xf32, #tpu.memory_space<vmem>>, %arg2: memref<8x32xf32, #tpu.memory_space<vmem>>, %arg3: memref<32x64xbf16, #tpu.memory_space<vmem>>, %arg4: memref<32x64xbf16, #tpu.memory_space<vmem>>, %arg5: memref<64x32xbf16, #tpu.memory_space<vmem>>, %arg6: memref<32x64xbf16, #tpu.memory_space<vmem>>, %arg7: memref<32x64xbf16, #tpu.memory_space<vmem>>, %arg8: memref<64x32xbf16, #tpu.memory_space<vmem>>, %arg9: memref<32x64xbf16, #tpu.memory_space<vmem>>, %arg10: memref<64x32xbf16, #tpu.memory_space<vmem>>, %arg11: memref<16x128xf32, #tpu.memory_space<vmem>>, %arg12: memref<8x32xf32, #tpu.memory_space<vmem>>) attributes {dimension_semantics = [#tpu.dimension_semantics<parallel>], iteration_bounds = array<i64: 2>, scalar_prefetch = 0 : i64, scratch_operands = 0 : i64, tpu.core_type = #tpu.core_type<tc>, window_params = [{transform_indices = @transform_0, window_bounds = array<i64: 8, 32>}, {transform_indices = @transform_1, window_bounds = array<i64: 8, 32>}, {pipeline_mode = #tpu.pipeline_mode<synchronous>, transform_indices = @transform_2, window_bounds = array<i64: 32, 64>}, {pipeline_mode = #tpu.pipeline_mode<synchronous>, transform_indices = @transform_3, window_bounds = array<i64: 32, 64>}, {pipeline_mode = #tpu.pipeline_mode<synchronous>, transform_indices = @transform_4, window_bounds = array<i64: 64, 32>}, {pipeline_mode = #tpu.pipeline_mode<synchronous>, transform_indices = @transform_5, window_bounds = array<i64: 32, 64>}, {pipeline_mode = #tpu.pipeline_mode<synchronous>, transform_indices = @transform_6, window_bounds = array<i64: 32, 64>}, {pipeline_mode = #tpu.pipeline_mode<synchronous>, transform_indices = @transform_7, window_bounds = array<i64: 64, 32>}, {pipeline_mode = #tpu.pipeline_mode<synchronous>, transform_indices = @transform_8, window_bounds = array<i64: 32, 64>}, {pipeline_mode = #tpu.pipeline_mode<synchronous>, transform_indices = @transform_9, window_bounds = array<i64: 64, 32>}, {pipeline_mode = #tpu.pipeline_mode<synchronous>, transform_indices = @transform_10, window_bounds = array<i64: 16, 128>}, {transform_indices = @transform_11, window_bounds = array<i64: 8, 32>}]} {
    %c0 = arith.constant 0 : index
    %c0_0 = arith.constant 0 : index
    %0 = vector.load %arg11[%c0, %c0_0] : memref<16x128xf32, #tpu.memory_space<vmem>>, vector<1x64xf32>
    %c1 = arith.constant 1 : index
    %c0_1 = arith.constant 0 : index
    %1 = vector.load %arg11[%c1, %c0_1] : memref<16x128xf32, #tpu.memory_space<vmem>>, vector<1x64xf32>
    %c2 = arith.constant 2 : index
    %c0_2 = arith.constant 0 : index
    %2 = vector.load %arg11[%c2, %c0_2] : memref<16x128xf32, #tpu.memory_space<vmem>>, vector<1x32xf32>
    %c3 = arith.constant 3 : index
    %c0_3 = arith.constant 0 : index
    %3 = vector.load %arg11[%c3, %c0_3] : memref<16x128xf32, #tpu.memory_space<vmem>>, vector<1x32xf32>
    %c4 = arith.constant 4 : index
    %c0_4 = arith.constant 0 : index
    %4 = vector.load %arg11[%c4, %c0_4] : memref<16x128xf32, #tpu.memory_space<vmem>>, vector<1x32xf32>
    %c5 = arith.constant 5 : index
    %c0_5 = arith.constant 0 : index
    %5 = vector.load %arg11[%c5, %c0_5] : memref<16x128xf32, #tpu.memory_space<vmem>>, vector<1x64xf32>
    %c6 = arith.constant 6 : index
    %c0_6 = arith.constant 0 : index
    %6 = vector.load %arg11[%c6, %c0_6] : memref<16x128xf32, #tpu.memory_space<vmem>>, vector<1x64xf32>
    %c7 = arith.constant 7 : index
    %c0_7 = arith.constant 0 : index
    %7 = vector.load %arg11[%c7, %c0_7] : memref<16x128xf32, #tpu.memory_space<vmem>>, vector<1x32xf32>
    %c8 = arith.constant 8 : index
    %c0_8 = arith.constant 0 : index
    %8 = vector.load %arg11[%c8, %c0_8] : memref<16x128xf32, #tpu.memory_space<vmem>>, vector<1x32xf32>
    %c9 = arith.constant 9 : index
    %c0_9 = arith.constant 0 : index
    %9 = vector.load %arg11[%c9, %c0_9] : memref<16x128xf32, #tpu.memory_space<vmem>>, vector<1x32xf32>
    %c10 = arith.constant 10 : index
    %c0_10 = arith.constant 0 : index
    %10 = vector.load %arg11[%c10, %c0_10] : memref<16x128xf32, #tpu.memory_space<vmem>>, vector<1x64xf32>
    %c11 = arith.constant 11 : index
    %c0_11 = arith.constant 0 : index
    %11 = vector.load %arg11[%c11, %c0_11] : memref<16x128xf32, #tpu.memory_space<vmem>>, vector<1x32xf32>
    %c12 = arith.constant 12 : index
    %c0_12 = arith.constant 0 : index
    %12 = vector.load %arg11[%c12, %c0_12] : memref<16x128xf32, #tpu.memory_space<vmem>>, vector<1x32xf32>
    %c13 = arith.constant 13 : index
    %c0_13 = arith.constant 0 : index
    %13 = vector.load %arg11[%c13, %c0_13] : memref<16x128xf32, #tpu.memory_space<vmem>>, vector<1x32xf32>
    %14 = tpu.iota {dimensions = array<i32: 1>} : vector<1x64xi32>
    %c0_i32 = arith.constant 0 : i32
    %15 = vector.broadcast %c0_i32 : i32 to vector<1x64xi32>
    %16 = arith.cmpi sge, %14, %15 : vector<1x64xi32>
    %c8_i32 = arith.constant 8 : i32
    %17 = vector.broadcast %c8_i32 : i32 to vector<1x64xi32>
    %18 = arith.cmpi slt, %14, %17 : vector<1x64xi32>
    %19 = arith.andi %16, %18 : vector<1x64xi1>
    %c8_i32_14 = arith.constant 8 : i32
    %20 = vector.broadcast %c8_i32_14 : i32 to vector<1x64xi32>
    %21 = arith.cmpi sge, %14, %20 : vector<1x64xi32>
    %c16_i32 = arith.constant 16 : i32
    %22 = vector.broadcast %c16_i32 : i32 to vector<1x64xi32>
    %23 = arith.cmpi slt, %14, %22 : vector<1x64xi32>
    %24 = arith.andi %21, %23 : vector<1x64xi1>
    %c16_i32_15 = arith.constant 16 : i32
    %25 = vector.broadcast %c16_i32_15 : i32 to vector<1x64xi32>
    %26 = arith.cmpi sge, %14, %25 : vector<1x64xi32>
    %c24_i32 = arith.constant 24 : i32
    %27 = vector.broadcast %c24_i32 : i32 to vector<1x64xi32>
    %28 = arith.cmpi slt, %14, %27 : vector<1x64xi32>
    %29 = arith.andi %26, %28 : vector<1x64xi1>
    %c24_i32_16 = arith.constant 24 : i32
    %30 = vector.broadcast %c24_i32_16 : i32 to vector<1x64xi32>
    %31 = arith.cmpi sge, %14, %30 : vector<1x64xi32>
    %c32_i32 = arith.constant 32 : i32
    %32 = vector.broadcast %c32_i32 : i32 to vector<1x64xi32>
    %33 = arith.cmpi slt, %14, %32 : vector<1x64xi32>
    %34 = arith.andi %31, %33 : vector<1x64xi1>
    %c32_i32_17 = arith.constant 32 : i32
    %35 = vector.broadcast %c32_i32_17 : i32 to vector<1x64xi32>
    %36 = arith.cmpi sge, %14, %35 : vector<1x64xi32>
    %c40_i32 = arith.constant 40 : i32
    %37 = vector.broadcast %c40_i32 : i32 to vector<1x64xi32>
    %38 = arith.cmpi slt, %14, %37 : vector<1x64xi32>
    %39 = arith.andi %36, %38 : vector<1x64xi1>
    %c40_i32_18 = arith.constant 40 : i32
    %40 = vector.broadcast %c40_i32_18 : i32 to vector<1x64xi32>
    %41 = arith.cmpi sge, %14, %40 : vector<1x64xi32>
    %c48_i32 = arith.constant 48 : i32
    %42 = vector.broadcast %c48_i32 : i32 to vector<1x64xi32>
    %43 = arith.cmpi slt, %14, %42 : vector<1x64xi32>
    %44 = arith.andi %41, %43 : vector<1x64xi1>
    %c48_i32_19 = arith.constant 48 : i32
    %45 = vector.broadcast %c48_i32_19 : i32 to vector<1x64xi32>
    %46 = arith.cmpi sge, %14, %45 : vector<1x64xi32>
    %c56_i32 = arith.constant 56 : i32
    %47 = vector.broadcast %c56_i32 : i32 to vector<1x64xi32>
    %48 = arith.cmpi slt, %14, %47 : vector<1x64xi32>
    %49 = arith.andi %46, %48 : vector<1x64xi1>
    %c56_i32_20 = arith.constant 56 : i32
    %50 = vector.broadcast %c56_i32_20 : i32 to vector<1x64xi32>
    %51 = arith.cmpi sge, %14, %50 : vector<1x64xi32>
    %c64_i32 = arith.constant 64 : i32
    %52 = vector.broadcast %c64_i32 : i32 to vector<1x64xi32>
    %53 = arith.cmpi slt, %14, %52 : vector<1x64xi32>
    %54 = arith.andi %51, %53 : vector<1x64xi1>
    %c0_21 = arith.constant 0 : index
    %c0_22 = arith.constant 0 : index
    %55 = vector.load %arg1[%c0_21, %c0_22] : memref<8x32xf32, #tpu.memory_space<vmem>>, vector<8x32xf32>
    %56 = arith.truncf %55 : vector<8x32xf32> to vector<8x32xbf16>
    %c0_23 = arith.constant 0 : index
    %c0_24 = arith.constant 0 : index
    %57 = vector.load %arg3[%c0_23, %c0_24] : memref<32x64xbf16, #tpu.memory_space<vmem>>, vector<32x64xbf16>
    %cst = arith.constant dense<0.000000e+00> : vector<8x64xf32>
    %58 = tpu.matmul %56, %57, %cst {dimension_numbers = #tpu.dot_dimension_numbers<[1], [0], [0], [1], [0, 0, 1, 1], [], []>} : vector<8x32xbf16>, vector<32x64xbf16>, vector<8x64xf32> -> vector<8x64xf32>
    %59 = vector.broadcast %0 : vector<1x64xf32> to vector<8x64xf32>
    %60 = arith.addf %58, %59 : vector<8x64xf32>
    %c0_25 = arith.constant 0 : index
    %c0_26 = arith.constant 0 : index
    %61 = vector.load %arg4[%c0_25, %c0_26] : memref<32x64xbf16, #tpu.memory_space<vmem>>, vector<32x64xbf16>
    %cst_27 = arith.constant dense<0.000000e+00> : vector<8x64xf32>
    %62 = tpu.matmul %56, %61, %cst_27 {dimension_numbers = #tpu.dot_dimension_numbers<[1], [0], [0], [1], [0, 0, 1, 1], [], []>} : vector<8x32xbf16>, vector<32x64xbf16>, vector<8x64xf32> -> vector<8x64xf32>
    %63 = vector.broadcast %1 : vector<1x64xf32> to vector<8x64xf32>
    %64 = arith.addf %62, %63 : vector<8x64xf32>
    %65 = arith.truncf %60 : vector<8x64xf32> to vector<8x64xbf16>
    %66 = arith.truncf %64 : vector<8x64xf32> to vector<8x64xbf16>
    %cst_28 = arith.constant 0.000000e+00 : f32
    %67 = vector.broadcast %cst_28 : f32 to vector<8x64xf32>
    %c0_i32_29 = arith.constant 0 : i32
    %68 = arith.sitofp %c0_i32_29 : i32 to bf16
    %69 = vector.shape_cast %19 : vector<1x64xi1> to vector<1x64xi1>
    %70 = vector.broadcast %69 : vector<1x64xi1> to vector<8x64xi1>
    %71 = vector.broadcast %68 : bf16 to vector<8x64xbf16>
    %72 = arith.select %70, %65, %71 : vector<8x64xi1>, vector<8x64xbf16>
    %c0_i32_30 = arith.constant 0 : i32
    %73 = arith.sitofp %c0_i32_30 : i32 to bf16
    %74 = vector.shape_cast %19 : vector<1x64xi1> to vector<1x64xi1>
    %75 = vector.broadcast %74 : vector<1x64xi1> to vector<8x64xi1>
    %76 = vector.broadcast %73 : bf16 to vector<8x64xbf16>
    %77 = arith.select %75, %66, %76 : vector<8x64xi1>, vector<8x64xbf16>
    %cst_31 = arith.constant dense<0.000000e+00> : vector<8x8xf32>
    %78 = tpu.matmul %72, %77, %cst_31 {dimension_numbers = #tpu.dot_dimension_numbers<[1], [1], [0], [0], [0, 0, 1, 0], [], []>} : vector<8x64xbf16>, vector<8x64xbf16>, vector<8x8xf32> -> vector<8x8xf32>
    %cst_32 = arith.constant dense<0xFF800000> : vector<8xf32>
    %79 = vector.multi_reduction <maximumf>, %78, %cst_32 [1] : vector<8x8xf32> to vector<8xf32>
    %80 = vector.shape_cast %79 : vector<8xf32> to vector<8x1xf32>
    %81 = vector.broadcast %80 : vector<8x1xf32> to vector<8x8xf32>
    %82 = arith.subf %78, %81 : vector<8x8xf32>
    %83 = math.exp %82 : vector<8x8xf32>
    %cst_33 = arith.constant dense<0.000000e+00> : vector<8xf32>
    %84 = vector.multi_reduction <add>, %83, %cst_33 [1] : vector<8x8xf32> to vector<8xf32>
    %85 = vector.shape_cast %84 : vector<8xf32> to vector<8x1xf32>
    %86 = tpu.reciprocal %85 {approx = true} : vector<8x1xf32> -> vector<8x1xf32>
    %87 = vector.broadcast %86 : vector<8x1xf32> to vector<8x8xf32>
    %88 = arith.mulf %83, %87 : vector<8x8xf32>
    %89 = arith.truncf %88 : vector<8x8xf32> to vector<8x8xbf16>
    %c0_i32_34 = arith.constant 0 : i32
    %90 = arith.sitofp %c0_i32_34 : i32 to bf16
    %91 = vector.shape_cast %39 : vector<1x64xi1> to vector<1x64xi1>
    %92 = vector.broadcast %91 : vector<1x64xi1> to vector<8x64xi1>
    %93 = vector.broadcast %90 : bf16 to vector<8x64xbf16>
    %94 = arith.select %92, %65, %93 : vector<8x64xi1>, vector<8x64xbf16>
    %cst_35 = arith.constant dense<0.000000e+00> : vector<8x64xf32>
    %95 = tpu.matmul %89, %94, %cst_35 {dimension_numbers = #tpu.dot_dimension_numbers<[1], [0], [0], [1], [0, 0, 1, 1], [], []>} : vector<8x8xbf16>, vector<8x64xbf16>, vector<8x64xf32> -> vector<8x64xf32>
    %96 = arith.addf %67, %95 : vector<8x64xf32>
    %c0_i32_36 = arith.constant 0 : i32
    %97 = arith.sitofp %c0_i32_36 : i32 to bf16
    %98 = vector.shape_cast %24 : vector<1x64xi1> to vector<1x64xi1>
    %99 = vector.broadcast %98 : vector<1x64xi1> to vector<8x64xi1>
    %100 = vector.broadcast %97 : bf16 to vector<8x64xbf16>
    %101 = arith.select %99, %65, %100 : vector<8x64xi1>, vector<8x64xbf16>
    %c0_i32_37 = arith.constant 0 : i32
    %102 = arith.sitofp %c0_i32_37 : i32 to bf16
    %103 = vector.shape_cast %24 : vector<1x64xi1> to vector<1x64xi1>
    %104 = vector.broadcast %103 : vector<1x64xi1> to vector<8x64xi1>
    %105 = vector.broadcast %102 : bf16 to vector<8x64xbf16>
    %106 = arith.select %104, %66, %105 : vector<8x64xi1>, vector<8x64xbf16>
    %cst_38 = arith.constant dense<0.000000e+00> : vector<8x8xf32>
    %107 = tpu.matmul %101, %106, %cst_38 {dimension_numbers = #tpu.dot_dimension_numbers<[1], [1], [0], [0], [0, 0, 1, 0], [], []>} : vector<8x64xbf16>, vector<8x64xbf16>, vector<8x8xf32> -> vector<8x8xf32>
    %cst_39 = arith.constant dense<0xFF800000> : vector<8xf32>
    %108 = vector.multi_reduction <maximumf>, %107, %cst_39 [1] : vector<8x8xf32> to vector<8xf32>
    %109 = vector.shape_cast %108 : vector<8xf32> to vector<8x1xf32>
    %110 = vector.broadcast %109 : vector<8x1xf32> to vector<8x8xf32>
    %111 = arith.subf %107, %110 : vector<8x8xf32>
    %112 = math.exp %111 : vector<8x8xf32>
    %cst_40 = arith.constant dense<0.000000e+00> : vector<8xf32>
    %113 = vector.multi_reduction <add>, %112, %cst_40 [1] : vector<8x8xf32> to vector<8xf32>
    %114 = vector.shape_cast %113 : vector<8xf32> to vector<8x1xf32>
    %115 = tpu.reciprocal %114 {approx = true} : vector<8x1xf32> -> vector<8x1xf32>
    %116 = vector.broadcast %115 : vector<8x1xf32> to vector<8x8xf32>
    %117 = arith.mulf %112, %116 : vector<8x8xf32>
    %118 = arith.truncf %117 : vector<8x8xf32> to vector<8x8xbf16>
    %c0_i32_41 = arith.constant 0 : i32
    %119 = arith.sitofp %c0_i32_41 : i32 to bf16
    %120 = vector.shape_cast %44 : vector<1x64xi1> to vector<1x64xi1>
    %121 = vector.broadcast %120 : vector<1x64xi1> to vector<8x64xi1>
    %122 = vector.broadcast %119 : bf16 to vector<8x64xbf16>
    %123 = arith.select %121, %65, %122 : vector<8x64xi1>, vector<8x64xbf16>
    %cst_42 = arith.constant dense<0.000000e+00> : vector<8x64xf32>
    %124 = tpu.matmul %118, %123, %cst_42 {dimension_numbers = #tpu.dot_dimension_numbers<[1], [0], [0], [1], [0, 0, 1, 1], [], []>} : vector<8x8xbf16>, vector<8x64xbf16>, vector<8x64xf32> -> vector<8x64xf32>
    %125 = arith.addf %96, %124 : vector<8x64xf32>
    %c0_i32_43 = arith.constant 0 : i32
    %126 = arith.sitofp %c0_i32_43 : i32 to bf16
    %127 = vector.shape_cast %29 : vector<1x64xi1> to vector<1x64xi1>
    %128 = vector.broadcast %127 : vector<1x64xi1> to vector<8x64xi1>
    %129 = vector.broadcast %126 : bf16 to vector<8x64xbf16>
    %130 = arith.select %128, %65, %129 : vector<8x64xi1>, vector<8x64xbf16>
    %c0_i32_44 = arith.constant 0 : i32
    %131 = arith.sitofp %c0_i32_44 : i32 to bf16
    %132 = vector.shape_cast %29 : vector<1x64xi1> to vector<1x64xi1>
    %133 = vector.broadcast %132 : vector<1x64xi1> to vector<8x64xi1>
    %134 = vector.broadcast %131 : bf16 to vector<8x64xbf16>
    %135 = arith.select %133, %66, %134 : vector<8x64xi1>, vector<8x64xbf16>
    %cst_45 = arith.constant dense<0.000000e+00> : vector<8x8xf32>
    %136 = tpu.matmul %130, %135, %cst_45 {dimension_numbers = #tpu.dot_dimension_numbers<[1], [1], [0], [0], [0, 0, 1, 0], [], []>} : vector<8x64xbf16>, vector<8x64xbf16>, vector<8x8xf32> -> vector<8x8xf32>
    %cst_46 = arith.constant dense<0xFF800000> : vector<8xf32>
    %137 = vector.multi_reduction <maximumf>, %136, %cst_46 [1] : vector<8x8xf32> to vector<8xf32>
    %138 = vector.shape_cast %137 : vector<8xf32> to vector<8x1xf32>
    %139 = vector.broadcast %138 : vector<8x1xf32> to vector<8x8xf32>
    %140 = arith.subf %136, %139 : vector<8x8xf32>
    %141 = math.exp %140 : vector<8x8xf32>
    %cst_47 = arith.constant dense<0.000000e+00> : vector<8xf32>
    %142 = vector.multi_reduction <add>, %141, %cst_47 [1] : vector<8x8xf32> to vector<8xf32>
    %143 = vector.shape_cast %142 : vector<8xf32> to vector<8x1xf32>
    %144 = tpu.reciprocal %143 {approx = true} : vector<8x1xf32> -> vector<8x1xf32>
    %145 = vector.broadcast %144 : vector<8x1xf32> to vector<8x8xf32>
    %146 = arith.mulf %141, %145 : vector<8x8xf32>
    %147 = arith.truncf %146 : vector<8x8xf32> to vector<8x8xbf16>
    %c0_i32_48 = arith.constant 0 : i32
    %148 = arith.sitofp %c0_i32_48 : i32 to bf16
    %149 = vector.shape_cast %49 : vector<1x64xi1> to vector<1x64xi1>
    %150 = vector.broadcast %149 : vector<1x64xi1> to vector<8x64xi1>
    %151 = vector.broadcast %148 : bf16 to vector<8x64xbf16>
    %152 = arith.select %150, %65, %151 : vector<8x64xi1>, vector<8x64xbf16>
    %cst_49 = arith.constant dense<0.000000e+00> : vector<8x64xf32>
    %153 = tpu.matmul %147, %152, %cst_49 {dimension_numbers = #tpu.dot_dimension_numbers<[1], [0], [0], [1], [0, 0, 1, 1], [], []>} : vector<8x8xbf16>, vector<8x64xbf16>, vector<8x64xf32> -> vector<8x64xf32>
    %154 = arith.addf %125, %153 : vector<8x64xf32>
    %c0_i32_50 = arith.constant 0 : i32
    %155 = arith.sitofp %c0_i32_50 : i32 to bf16
    %156 = vector.shape_cast %34 : vector<1x64xi1> to vector<1x64xi1>
    %157 = vector.broadcast %156 : vector<1x64xi1> to vector<8x64xi1>
    %158 = vector.broadcast %155 : bf16 to vector<8x64xbf16>
    %159 = arith.select %157, %65, %158 : vector<8x64xi1>, vector<8x64xbf16>
    %c0_i32_51 = arith.constant 0 : i32
    %160 = arith.sitofp %c0_i32_51 : i32 to bf16
    %161 = vector.shape_cast %34 : vector<1x64xi1> to vector<1x64xi1>
    %162 = vector.broadcast %161 : vector<1x64xi1> to vector<8x64xi1>
    %163 = vector.broadcast %160 : bf16 to vector<8x64xbf16>
    %164 = arith.select %162, %66, %163 : vector<8x64xi1>, vector<8x64xbf16>
    %cst_52 = arith.constant dense<0.000000e+00> : vector<8x8xf32>
    %165 = tpu.matmul %159, %164, %cst_52 {dimension_numbers = #tpu.dot_dimension_numbers<[1], [1], [0], [0], [0, 0, 1, 0], [], []>} : vector<8x64xbf16>, vector<8x64xbf16>, vector<8x8xf32> -> vector<8x8xf32>
    %cst_53 = arith.constant dense<0xFF800000> : vector<8xf32>
    %166 = vector.multi_reduction <maximumf>, %165, %cst_53 [1] : vector<8x8xf32> to vector<8xf32>
    %167 = vector.shape_cast %166 : vector<8xf32> to vector<8x1xf32>
    %168 = vector.broadcast %167 : vector<8x1xf32> to vector<8x8xf32>
    %169 = arith.subf %165, %168 : vector<8x8xf32>
    %170 = math.exp %169 : vector<8x8xf32>
    %cst_54 = arith.constant dense<0.000000e+00> : vector<8xf32>
    %171 = vector.multi_reduction <add>, %170, %cst_54 [1] : vector<8x8xf32> to vector<8xf32>
    %172 = vector.shape_cast %171 : vector<8xf32> to vector<8x1xf32>
    %173 = tpu.reciprocal %172 {approx = true} : vector<8x1xf32> -> vector<8x1xf32>
    %174 = vector.broadcast %173 : vector<8x1xf32> to vector<8x8xf32>
    %175 = arith.mulf %170, %174 : vector<8x8xf32>
    %176 = arith.truncf %175 : vector<8x8xf32> to vector<8x8xbf16>
    %c0_i32_55 = arith.constant 0 : i32
    %177 = arith.sitofp %c0_i32_55 : i32 to bf16
    %178 = vector.shape_cast %54 : vector<1x64xi1> to vector<1x64xi1>
    %179 = vector.broadcast %178 : vector<1x64xi1> to vector<8x64xi1>
    %180 = vector.broadcast %177 : bf16 to vector<8x64xbf16>
    %181 = arith.select %179, %65, %180 : vector<8x64xi1>, vector<8x64xbf16>
    %cst_56 = arith.constant dense<0.000000e+00> : vector<8x64xf32>
    %182 = tpu.matmul %176, %181, %cst_56 {dimension_numbers = #tpu.dot_dimension_numbers<[1], [0], [0], [1], [0, 0, 1, 1], [], []>} : vector<8x8xbf16>, vector<8x64xbf16>, vector<8x64xf32> -> vector<8x64xf32>
    %183 = arith.addf %154, %182 : vector<8x64xf32>
    %184 = arith.truncf %183 : vector<8x64xf32> to vector<8x64xbf16>
    %c0_57 = arith.constant 0 : index
    %c0_58 = arith.constant 0 : index
    %185 = vector.load %arg5[%c0_57, %c0_58] : memref<64x32xbf16, #tpu.memory_space<vmem>>, vector<64x32xbf16>
    %cst_59 = arith.constant dense<0.000000e+00> : vector<8x32xf32>
    %186 = tpu.matmul %184, %185, %cst_59 {dimension_numbers = #tpu.dot_dimension_numbers<[1], [0], [0], [1], [0, 0, 1, 1], [], []>} : vector<8x64xbf16>, vector<64x32xbf16>, vector<8x32xf32> -> vector<8x32xf32>
    %187 = vector.broadcast %2 : vector<1x32xf32> to vector<8x32xf32>
    %188 = arith.addf %186, %187 : vector<8x32xf32>
    %189 = arith.addf %55, %188 : vector<8x32xf32>
    %cst_60 = arith.constant dense<0.000000e+00> : vector<8xf32>
    %190 = vector.multi_reduction <add>, %189, %cst_60 [1] : vector<8x32xf32> to vector<8xf32>
    %191 = vector.shape_cast %190 : vector<8xf32> to vector<8x1xf32>
    %cst_61 = arith.constant 3.200000e+01 : f32
    %192 = vector.broadcast %cst_61 : f32 to vector<8x1xf32>
    %193 = arith.divf %191, %192 : vector<8x1xf32>
    %194 = arith.mulf %189, %189 : vector<8x32xf32>
    %cst_62 = arith.constant dense<0.000000e+00> : vector<8xf32>
    %195 = vector.multi_reduction <add>, %194, %cst_62 [1] : vector<8x32xf32> to vector<8xf32>
    %196 = vector.shape_cast %195 : vector<8xf32> to vector<8x1xf32>
    %cst_63 = arith.constant 3.200000e+01 : f32
    %197 = vector.broadcast %cst_63 : f32 to vector<8x1xf32>
    %198 = arith.divf %196, %197 : vector<8x1xf32>
    %199 = arith.mulf %193, %193 : vector<8x1xf32>
    %200 = arith.subf %198, %199 : vector<8x1xf32>
    %cst_64 = arith.constant 9.99999974E-6 : f32
    %201 = vector.broadcast %cst_64 : f32 to vector<8x1xf32>
    %202 = arith.addf %200, %201 : vector<8x1xf32>
    %203 = math.rsqrt %202 : vector<8x1xf32>
    %204 = vector.broadcast %193 : vector<8x1xf32> to vector<8x32xf32>
    %205 = arith.subf %189, %204 : vector<8x32xf32>
    %206 = vector.broadcast %203 : vector<8x1xf32> to vector<8x32xf32>
    %207 = arith.mulf %205, %206 : vector<8x32xf32>
    %208 = vector.broadcast %3 : vector<1x32xf32> to vector<8x32xf32>
    %209 = arith.mulf %207, %208 : vector<8x32xf32>
    %210 = vector.broadcast %4 : vector<1x32xf32> to vector<8x32xf32>
    %211 = arith.addf %209, %210 : vector<8x32xf32>
    %212 = arith.truncf %211 : vector<8x32xf32> to vector<8x32xbf16>
    %c0_65 = arith.constant 0 : index
    %c0_66 = arith.constant 0 : index
    %213 = vector.load %arg2[%c0_65, %c0_66] : memref<8x32xf32, #tpu.memory_space<vmem>>, vector<8x32xf32>
    %214 = arith.truncf %213 : vector<8x32xf32> to vector<8x32xbf16>
    %c0_67 = arith.constant 0 : index
    %c0_68 = arith.constant 0 : index
    %215 = vector.load %arg6[%c0_67, %c0_68] : memref<32x64xbf16, #tpu.memory_space<vmem>>, vector<32x64xbf16>
    %cst_69 = arith.constant dense<0.000000e+00> : vector<8x64xf32>
    %216 = tpu.matmul %212, %215, %cst_69 {dimension_numbers = #tpu.dot_dimension_numbers<[1], [0], [0], [1], [0, 0, 1, 1], [], []>} : vector<8x32xbf16>, vector<32x64xbf16>, vector<8x64xf32> -> vector<8x64xf32>
    %217 = vector.broadcast %5 : vector<1x64xf32> to vector<8x64xf32>
    %218 = arith.addf %216, %217 : vector<8x64xf32>
    %c0_70 = arith.constant 0 : index
    %c0_71 = arith.constant 0 : index
    %219 = vector.load %arg7[%c0_70, %c0_71] : memref<32x64xbf16, #tpu.memory_space<vmem>>, vector<32x64xbf16>
    %cst_72 = arith.constant dense<0.000000e+00> : vector<8x64xf32>
    %220 = tpu.matmul %214, %219, %cst_72 {dimension_numbers = #tpu.dot_dimension_numbers<[1], [0], [0], [1], [0, 0, 1, 1], [], []>} : vector<8x32xbf16>, vector<32x64xbf16>, vector<8x64xf32> -> vector<8x64xf32>
    %221 = vector.broadcast %6 : vector<1x64xf32> to vector<8x64xf32>
    %222 = arith.addf %220, %221 : vector<8x64xf32>
    %223 = arith.truncf %222 : vector<8x64xf32> to vector<8x64xbf16>
    %224 = arith.truncf %218 : vector<8x64xf32> to vector<8x64xbf16>
    %cst_73 = arith.constant 0.000000e+00 : f32
    %225 = vector.broadcast %cst_73 : f32 to vector<8x64xf32>
    %c0_i32_74 = arith.constant 0 : i32
    %226 = arith.sitofp %c0_i32_74 : i32 to bf16
    %227 = vector.shape_cast %19 : vector<1x64xi1> to vector<1x64xi1>
    %228 = vector.broadcast %227 : vector<1x64xi1> to vector<8x64xi1>
    %229 = vector.broadcast %226 : bf16 to vector<8x64xbf16>
    %230 = arith.select %228, %224, %229 : vector<8x64xi1>, vector<8x64xbf16>
    %c0_i32_75 = arith.constant 0 : i32
    %231 = arith.sitofp %c0_i32_75 : i32 to bf16
    %232 = vector.shape_cast %19 : vector<1x64xi1> to vector<1x64xi1>
    %233 = vector.broadcast %232 : vector<1x64xi1> to vector<8x64xi1>
    %234 = vector.broadcast %231 : bf16 to vector<8x64xbf16>
    %235 = arith.select %233, %223, %234 : vector<8x64xi1>, vector<8x64xbf16>
    %cst_76 = arith.constant dense<0.000000e+00> : vector<8x8xf32>
    %236 = tpu.matmul %230, %235, %cst_76 {dimension_numbers = #tpu.dot_dimension_numbers<[1], [1], [0], [0], [0, 0, 1, 0], [], []>} : vector<8x64xbf16>, vector<8x64xbf16>, vector<8x8xf32> -> vector<8x8xf32>
    %cst_77 = arith.constant dense<0xFF800000> : vector<8xf32>
    %237 = vector.multi_reduction <maximumf>, %236, %cst_77 [1] : vector<8x8xf32> to vector<8xf32>
    %238 = vector.shape_cast %237 : vector<8xf32> to vector<8x1xf32>
    %239 = vector.broadcast %238 : vector<8x1xf32> to vector<8x8xf32>
    %240 = arith.subf %236, %239 : vector<8x8xf32>
    %241 = math.exp %240 : vector<8x8xf32>
    %cst_78 = arith.constant dense<0.000000e+00> : vector<8xf32>
    %242 = vector.multi_reduction <add>, %241, %cst_78 [1] : vector<8x8xf32> to vector<8xf32>
    %243 = vector.shape_cast %242 : vector<8xf32> to vector<8x1xf32>
    %244 = tpu.reciprocal %243 {approx = true} : vector<8x1xf32> -> vector<8x1xf32>
    %245 = vector.broadcast %244 : vector<8x1xf32> to vector<8x8xf32>
    %246 = arith.mulf %241, %245 : vector<8x8xf32>
    %247 = arith.truncf %246 : vector<8x8xf32> to vector<8x8xbf16>
    %c0_i32_79 = arith.constant 0 : i32
    %248 = arith.sitofp %c0_i32_79 : i32 to bf16
    %249 = vector.shape_cast %39 : vector<1x64xi1> to vector<1x64xi1>
    %250 = vector.broadcast %249 : vector<1x64xi1> to vector<8x64xi1>
    %251 = vector.broadcast %248 : bf16 to vector<8x64xbf16>
    %252 = arith.select %250, %223, %251 : vector<8x64xi1>, vector<8x64xbf16>
    %cst_80 = arith.constant dense<0.000000e+00> : vector<8x64xf32>
    %253 = tpu.matmul %247, %252, %cst_80 {dimension_numbers = #tpu.dot_dimension_numbers<[1], [0], [0], [1], [0, 0, 1, 1], [], []>} : vector<8x8xbf16>, vector<8x64xbf16>, vector<8x64xf32> -> vector<8x64xf32>
    %254 = arith.addf %225, %253 : vector<8x64xf32>
    %c0_i32_81 = arith.constant 0 : i32
    %255 = arith.sitofp %c0_i32_81 : i32 to bf16
    %256 = vector.shape_cast %24 : vector<1x64xi1> to vector<1x64xi1>
    %257 = vector.broadcast %256 : vector<1x64xi1> to vector<8x64xi1>
    %258 = vector.broadcast %255 : bf16 to vector<8x64xbf16>
    %259 = arith.select %257, %224, %258 : vector<8x64xi1>, vector<8x64xbf16>
    %c0_i32_82 = arith.constant 0 : i32
    %260 = arith.sitofp %c0_i32_82 : i32 to bf16
    %261 = vector.shape_cast %24 : vector<1x64xi1> to vector<1x64xi1>
    %262 = vector.broadcast %261 : vector<1x64xi1> to vector<8x64xi1>
    %263 = vector.broadcast %260 : bf16 to vector<8x64xbf16>
    %264 = arith.select %262, %223, %263 : vector<8x64xi1>, vector<8x64xbf16>
    %cst_83 = arith.constant dense<0.000000e+00> : vector<8x8xf32>
    %265 = tpu.matmul %259, %264, %cst_83 {dimension_numbers = #tpu.dot_dimension_numbers<[1], [1], [0], [0], [0, 0, 1, 0], [], []>} : vector<8x64xbf16>, vector<8x64xbf16>, vector<8x8xf32> -> vector<8x8xf32>
    %cst_84 = arith.constant dense<0xFF800000> : vector<8xf32>
    %266 = vector.multi_reduction <maximumf>, %265, %cst_84 [1] : vector<8x8xf32> to vector<8xf32>
    %267 = vector.shape_cast %266 : vector<8xf32> to vector<8x1xf32>
    %268 = vector.broadcast %267 : vector<8x1xf32> to vector<8x8xf32>
    %269 = arith.subf %265, %268 : vector<8x8xf32>
    %270 = math.exp %269 : vector<8x8xf32>
    %cst_85 = arith.constant dense<0.000000e+00> : vector<8xf32>
    %271 = vector.multi_reduction <add>, %270, %cst_85 [1] : vector<8x8xf32> to vector<8xf32>
    %272 = vector.shape_cast %271 : vector<8xf32> to vector<8x1xf32>
    %273 = tpu.reciprocal %272 {approx = true} : vector<8x1xf32> -> vector<8x1xf32>
    %274 = vector.broadcast %273 : vector<8x1xf32> to vector<8x8xf32>
    %275 = arith.mulf %270, %274 : vector<8x8xf32>
    %276 = arith.truncf %275 : vector<8x8xf32> to vector<8x8xbf16>
    %c0_i32_86 = arith.constant 0 : i32
    %277 = arith.sitofp %c0_i32_86 : i32 to bf16
    %278 = vector.shape_cast %44 : vector<1x64xi1> to vector<1x64xi1>
    %279 = vector.broadcast %278 : vector<1x64xi1> to vector<8x64xi1>
    %280 = vector.broadcast %277 : bf16 to vector<8x64xbf16>
    %281 = arith.select %279, %223, %280 : vector<8x64xi1>, vector<8x64xbf16>
    %cst_87 = arith.constant dense<0.000000e+00> : vector<8x64xf32>
    %282 = tpu.matmul %276, %281, %cst_87 {dimension_numbers = #tpu.dot_dimension_numbers<[1], [0], [0], [1], [0, 0, 1, 1], [], []>} : vector<8x8xbf16>, vector<8x64xbf16>, vector<8x64xf32> -> vector<8x64xf32>
    %283 = arith.addf %254, %282 : vector<8x64xf32>
    %c0_i32_88 = arith.constant 0 : i32
    %284 = arith.sitofp %c0_i32_88 : i32 to bf16
    %285 = vector.shape_cast %29 : vector<1x64xi1> to vector<1x64xi1>
    %286 = vector.broadcast %285 : vector<1x64xi1> to vector<8x64xi1>
    %287 = vector.broadcast %284 : bf16 to vector<8x64xbf16>
    %288 = arith.select %286, %224, %287 : vector<8x64xi1>, vector<8x64xbf16>
    %c0_i32_89 = arith.constant 0 : i32
    %289 = arith.sitofp %c0_i32_89 : i32 to bf16
    %290 = vector.shape_cast %29 : vector<1x64xi1> to vector<1x64xi1>
    %291 = vector.broadcast %290 : vector<1x64xi1> to vector<8x64xi1>
    %292 = vector.broadcast %289 : bf16 to vector<8x64xbf16>
    %293 = arith.select %291, %223, %292 : vector<8x64xi1>, vector<8x64xbf16>
    %cst_90 = arith.constant dense<0.000000e+00> : vector<8x8xf32>
    %294 = tpu.matmul %288, %293, %cst_90 {dimension_numbers = #tpu.dot_dimension_numbers<[1], [1], [0], [0], [0, 0, 1, 0], [], []>} : vector<8x64xbf16>, vector<8x64xbf16>, vector<8x8xf32> -> vector<8x8xf32>
    %cst_91 = arith.constant dense<0xFF800000> : vector<8xf32>
    %295 = vector.multi_reduction <maximumf>, %294, %cst_91 [1] : vector<8x8xf32> to vector<8xf32>
    %296 = vector.shape_cast %295 : vector<8xf32> to vector<8x1xf32>
    %297 = vector.broadcast %296 : vector<8x1xf32> to vector<8x8xf32>
    %298 = arith.subf %294, %297 : vector<8x8xf32>
    %299 = math.exp %298 : vector<8x8xf32>
    %cst_92 = arith.constant dense<0.000000e+00> : vector<8xf32>
    %300 = vector.multi_reduction <add>, %299, %cst_92 [1] : vector<8x8xf32> to vector<8xf32>
    %301 = vector.shape_cast %300 : vector<8xf32> to vector<8x1xf32>
    %302 = tpu.reciprocal %301 {approx = true} : vector<8x1xf32> -> vector<8x1xf32>
    %303 = vector.broadcast %302 : vector<8x1xf32> to vector<8x8xf32>
    %304 = arith.mulf %299, %303 : vector<8x8xf32>
    %305 = arith.truncf %304 : vector<8x8xf32> to vector<8x8xbf16>
    %c0_i32_93 = arith.constant 0 : i32
    %306 = arith.sitofp %c0_i32_93 : i32 to bf16
    %307 = vector.shape_cast %49 : vector<1x64xi1> to vector<1x64xi1>
    %308 = vector.broadcast %307 : vector<1x64xi1> to vector<8x64xi1>
    %309 = vector.broadcast %306 : bf16 to vector<8x64xbf16>
    %310 = arith.select %308, %223, %309 : vector<8x64xi1>, vector<8x64xbf16>
    %cst_94 = arith.constant dense<0.000000e+00> : vector<8x64xf32>
    %311 = tpu.matmul %305, %310, %cst_94 {dimension_numbers = #tpu.dot_dimension_numbers<[1], [0], [0], [1], [0, 0, 1, 1], [], []>} : vector<8x8xbf16>, vector<8x64xbf16>, vector<8x64xf32> -> vector<8x64xf32>
    %312 = arith.addf %283, %311 : vector<8x64xf32>
    %c0_i32_95 = arith.constant 0 : i32
    %313 = arith.sitofp %c0_i32_95 : i32 to bf16
    %314 = vector.shape_cast %34 : vector<1x64xi1> to vector<1x64xi1>
    %315 = vector.broadcast %314 : vector<1x64xi1> to vector<8x64xi1>
    %316 = vector.broadcast %313 : bf16 to vector<8x64xbf16>
    %317 = arith.select %315, %224, %316 : vector<8x64xi1>, vector<8x64xbf16>
    %c0_i32_96 = arith.constant 0 : i32
    %318 = arith.sitofp %c0_i32_96 : i32 to bf16
    %319 = vector.shape_cast %34 : vector<1x64xi1> to vector<1x64xi1>
    %320 = vector.broadcast %319 : vector<1x64xi1> to vector<8x64xi1>
    %321 = vector.broadcast %318 : bf16 to vector<8x64xbf16>
    %322 = arith.select %320, %223, %321 : vector<8x64xi1>, vector<8x64xbf16>
    %cst_97 = arith.constant dense<0.000000e+00> : vector<8x8xf32>
    %323 = tpu.matmul %317, %322, %cst_97 {dimension_numbers = #tpu.dot_dimension_numbers<[1], [1], [0], [0], [0, 0, 1, 0], [], []>} : vector<8x64xbf16>, vector<8x64xbf16>, vector<8x8xf32> -> vector<8x8xf32>
    %cst_98 = arith.constant dense<0xFF800000> : vector<8xf32>
    %324 = vector.multi_reduction <maximumf>, %323, %cst_98 [1] : vector<8x8xf32> to vector<8xf32>
    %325 = vector.shape_cast %324 : vector<8xf32> to vector<8x1xf32>
    %326 = vector.broadcast %325 : vector<8x1xf32> to vector<8x8xf32>
    %327 = arith.subf %323, %326 : vector<8x8xf32>
    %328 = math.exp %327 : vector<8x8xf32>
    %cst_99 = arith.constant dense<0.000000e+00> : vector<8xf32>
    %329 = vector.multi_reduction <add>, %328, %cst_99 [1] : vector<8x8xf32> to vector<8xf32>
    %330 = vector.shape_cast %329 : vector<8xf32> to vector<8x1xf32>
    %331 = tpu.reciprocal %330 {approx = true} : vector<8x1xf32> -> vector<8x1xf32>
    %332 = vector.broadcast %331 : vector<8x1xf32> to vector<8x8xf32>
    %333 = arith.mulf %328, %332 : vector<8x8xf32>
    %334 = arith.truncf %333 : vector<8x8xf32> to vector<8x8xbf16>
    %c0_i32_100 = arith.constant 0 : i32
    %335 = arith.sitofp %c0_i32_100 : i32 to bf16
    %336 = vector.shape_cast %54 : vector<1x64xi1> to vector<1x64xi1>
    %337 = vector.broadcast %336 : vector<1x64xi1> to vector<8x64xi1>
    %338 = vector.broadcast %335 : bf16 to vector<8x64xbf16>
    %339 = arith.select %337, %223, %338 : vector<8x64xi1>, vector<8x64xbf16>
    %cst_101 = arith.constant dense<0.000000e+00> : vector<8x64xf32>
    %340 = tpu.matmul %334, %339, %cst_101 {dimension_numbers = #tpu.dot_dimension_numbers<[1], [0], [0], [1], [0, 0, 1, 1], [], []>} : vector<8x8xbf16>, vector<8x64xbf16>, vector<8x64xf32> -> vector<8x64xf32>
    %341 = arith.addf %312, %340 : vector<8x64xf32>
    %342 = arith.truncf %341 : vector<8x64xf32> to vector<8x64xbf16>
    %c0_102 = arith.constant 0 : index
    %c0_103 = arith.constant 0 : index
    %343 = vector.load %arg8[%c0_102, %c0_103] : memref<64x32xbf16, #tpu.memory_space<vmem>>, vector<64x32xbf16>
    %cst_104 = arith.constant dense<0.000000e+00> : vector<8x32xf32>
    %344 = tpu.matmul %342, %343, %cst_104 {dimension_numbers = #tpu.dot_dimension_numbers<[1], [0], [0], [1], [0, 0, 1, 1], [], []>} : vector<8x64xbf16>, vector<64x32xbf16>, vector<8x32xf32> -> vector<8x32xf32>
    %345 = vector.broadcast %7 : vector<1x32xf32> to vector<8x32xf32>
    %346 = arith.addf %344, %345 : vector<8x32xf32>
    %347 = arith.addf %211, %346 : vector<8x32xf32>
    %cst_105 = arith.constant dense<0.000000e+00> : vector<8xf32>
    %348 = vector.multi_reduction <add>, %347, %cst_105 [1] : vector<8x32xf32> to vector<8xf32>
    %349 = vector.shape_cast %348 : vector<8xf32> to vector<8x1xf32>
    %cst_106 = arith.constant 3.200000e+01 : f32
    %350 = vector.broadcast %cst_106 : f32 to vector<8x1xf32>
    %351 = arith.divf %349, %350 : vector<8x1xf32>
    %352 = arith.mulf %347, %347 : vector<8x32xf32>
    %cst_107 = arith.constant dense<0.000000e+00> : vector<8xf32>
    %353 = vector.multi_reduction <add>, %352, %cst_107 [1] : vector<8x32xf32> to vector<8xf32>
    %354 = vector.shape_cast %353 : vector<8xf32> to vector<8x1xf32>
    %cst_108 = arith.constant 3.200000e+01 : f32
    %355 = vector.broadcast %cst_108 : f32 to vector<8x1xf32>
    %356 = arith.divf %354, %355 : vector<8x1xf32>
    %357 = arith.mulf %351, %351 : vector<8x1xf32>
    %358 = arith.subf %356, %357 : vector<8x1xf32>
    %cst_109 = arith.constant 9.99999974E-6 : f32
    %359 = vector.broadcast %cst_109 : f32 to vector<8x1xf32>
    %360 = arith.addf %358, %359 : vector<8x1xf32>
    %361 = math.rsqrt %360 : vector<8x1xf32>
    %362 = vector.broadcast %351 : vector<8x1xf32> to vector<8x32xf32>
    %363 = arith.subf %347, %362 : vector<8x32xf32>
    %364 = vector.broadcast %361 : vector<8x1xf32> to vector<8x32xf32>
    %365 = arith.mulf %363, %364 : vector<8x32xf32>
    %366 = vector.broadcast %8 : vector<1x32xf32> to vector<8x32xf32>
    %367 = arith.mulf %365, %366 : vector<8x32xf32>
    %368 = vector.broadcast %9 : vector<1x32xf32> to vector<8x32xf32>
    %369 = arith.addf %367, %368 : vector<8x32xf32>
    %370 = arith.truncf %369 : vector<8x32xf32> to vector<8x32xbf16>
    %c0_110 = arith.constant 0 : index
    %c0_111 = arith.constant 0 : index
    %371 = vector.load %arg9[%c0_110, %c0_111] : memref<32x64xbf16, #tpu.memory_space<vmem>>, vector<32x64xbf16>
    %cst_112 = arith.constant dense<0.000000e+00> : vector<8x64xf32>
    %372 = tpu.matmul %370, %371, %cst_112 {dimension_numbers = #tpu.dot_dimension_numbers<[1], [0], [0], [1], [0, 0, 1, 1], [], []>} : vector<8x32xbf16>, vector<32x64xbf16>, vector<8x64xf32> -> vector<8x64xf32>
    %373 = vector.broadcast %10 : vector<1x64xf32> to vector<8x64xf32>
    %374 = arith.addf %372, %373 : vector<8x64xf32>
    %cst_113 = arith.constant 0.000000e+00 : f32
    %375 = vector.broadcast %cst_113 : f32 to vector<8x64xf32>
    %376 = arith.cmpf oge, %374, %375 : vector<8x64xf32>
    %cst_114 = arith.constant 0.00999999977 : f32
    %377 = vector.broadcast %cst_114 : f32 to vector<8x64xf32>
    %378 = arith.mulf %377, %374 : vector<8x64xf32>
    %379 = arith.select %376, %374, %378 : vector<8x64xi1>, vector<8x64xf32>
    %380 = arith.truncf %379 : vector<8x64xf32> to vector<8x64xbf16>
    %c0_115 = arith.constant 0 : index
    %c0_116 = arith.constant 0 : index
    %381 = vector.load %arg10[%c0_115, %c0_116] : memref<64x32xbf16, #tpu.memory_space<vmem>>, vector<64x32xbf16>
    %cst_117 = arith.constant dense<0.000000e+00> : vector<8x32xf32>
    %382 = tpu.matmul %380, %381, %cst_117 {dimension_numbers = #tpu.dot_dimension_numbers<[1], [0], [0], [1], [0, 0, 1, 1], [], []>} : vector<8x64xbf16>, vector<64x32xbf16>, vector<8x32xf32> -> vector<8x32xf32>
    %383 = vector.broadcast %11 : vector<1x32xf32> to vector<8x32xf32>
    %384 = arith.addf %382, %383 : vector<8x32xf32>
    %cst_118 = arith.constant 0.000000e+00 : f32
    %385 = vector.broadcast %cst_118 : f32 to vector<8x32xf32>
    %386 = arith.maximumf %384, %385 : vector<8x32xf32>
    %387 = arith.addf %369, %386 : vector<8x32xf32>
    %cst_119 = arith.constant dense<0.000000e+00> : vector<8xf32>
    %388 = vector.multi_reduction <add>, %387, %cst_119 [1] : vector<8x32xf32> to vector<8xf32>
    %389 = vector.shape_cast %388 : vector<8xf32> to vector<8x1xf32>
    %cst_120 = arith.constant 3.200000e+01 : f32
    %390 = vector.broadcast %cst_120 : f32 to vector<8x1xf32>
    %391 = arith.divf %389, %390 : vector<8x1xf32>
    %392 = arith.mulf %387, %387 : vector<8x32xf32>
    %cst_121 = arith.constant dense<0.000000e+00> : vector<8xf32>
    %393 = vector.multi_reduction <add>, %392, %cst_121 [1] : vector<8x32xf32> to vector<8xf32>
    %394 = vector.shape_cast %393 : vector<8xf32> to vector<8x1xf32>
    %cst_122 = arith.constant 3.200000e+01 : f32
    %395 = vector.broadcast %cst_122 : f32 to vector<8x1xf32>
    %396 = arith.divf %394, %395 : vector<8x1xf32>
    %397 = arith.mulf %391, %391 : vector<8x1xf32>
    %398 = arith.subf %396, %397 : vector<8x1xf32>
    %cst_123 = arith.constant 9.99999974E-6 : f32
    %399 = vector.broadcast %cst_123 : f32 to vector<8x1xf32>
    %400 = arith.addf %398, %399 : vector<8x1xf32>
    %401 = math.rsqrt %400 : vector<8x1xf32>
    %402 = vector.broadcast %391 : vector<8x1xf32> to vector<8x32xf32>
    %403 = arith.subf %387, %402 : vector<8x32xf32>
    %404 = vector.broadcast %401 : vector<8x1xf32> to vector<8x32xf32>
    %405 = arith.mulf %403, %404 : vector<8x32xf32>
    %406 = vector.broadcast %12 : vector<1x32xf32> to vector<8x32xf32>
    %407 = arith.mulf %405, %406 : vector<8x32xf32>
    %408 = vector.broadcast %13 : vector<1x32xf32> to vector<8x32xf32>
    %409 = arith.addf %407, %408 : vector<8x32xf32>
    %c0_124 = arith.constant 0 : index
    %c0_125 = arith.constant 0 : index
    %410 = vector.load %arg12[%c0_124, %c0_125] : memref<8x32xf32, #tpu.memory_space<vmem>>, vector<8x32xf32>
    tpu.vector_store %arg12[%c0_124, %c0_125], %409 {strides = array<i32>} : memref<8x32xf32, #tpu.memory_space<vmem>>, vector<8x32xf32>,
    return
  }
  func.func @transform_0(%arg0: i32) -> (i32, i32) {
    %c0_i32 = arith.constant 0 : i32
    %c0_i32_0 = arith.constant 0 : i32
    return %arg0, %c0_i32 : i32, i32
  }
  func.func @transform_1(%arg0: i32) -> (i32, i32) {
    %c0_i32 = arith.constant 0 : i32
    %c0_i32_0 = arith.constant 0 : i32
    return %arg0, %c0_i32 : i32, i32
  }
  func.func @transform_2(%arg0: i32) -> (i32, i32) {
    %c0_i32 = arith.constant 0 : i32
    %c0_i32_0 = arith.constant 0 : i32
    %c0_i32_1 = arith.constant 0 : i32
    return %c0_i32, %c0_i32_0 : i32, i32
  }
  func.func @transform_3(%arg0: i32) -> (i32, i32) {
    %c0_i32 = arith.constant 0 : i32
    %c0_i32_0 = arith.constant 0 : i32
    %c0_i32_1 = arith.constant 0 : i32
    return %c0_i32, %c0_i32_0 : i32, i32
  }
  func.func @transform_4(%arg0: i32) -> (i32, i32) {
    %c0_i32 = arith.constant 0 : i32
    %c0_i32_0 = arith.constant 0 : i32
    %c0_i32_1 = arith.constant 0 : i32
    return %c0_i32, %c0_i32_0 : i32, i32
  }
  func.func @transform_5(%arg0: i32) -> (i32, i32) {
    %c0_i32 = arith.constant 0 : i32
    %c0_i32_0 = arith.constant 0 : i32
    %c0_i32_1 = arith.constant 0 : i32
    return %c0_i32, %c0_i32_0 : i32, i32
  }
  func.func @transform_6(%arg0: i32) -> (i32, i32) {
    %c0_i32 = arith.constant 0 : i32
    %c0_i32_0 = arith.constant 0 : i32
    %c0_i32_1 = arith.constant 0 : i32
    return %c0_i32, %c0_i32_0 : i32, i32
  }
  func.func @transform_7(%arg0: i32) -> (i32, i32) {
    %c0_i32 = arith.constant 0 : i32
    %c0_i32_0 = arith.constant 0 : i32
    %c0_i32_1 = arith.constant 0 : i32
    return %c0_i32, %c0_i32_0 : i32, i32
  }
  func.func @transform_8(%arg0: i32) -> (i32, i32) {
    %c0_i32 = arith.constant 0 : i32
    %c0_i32_0 = arith.constant 0 : i32
    %c0_i32_1 = arith.constant 0 : i32
    return %c0_i32, %c0_i32_0 : i32, i32
  }
  func.func @transform_9(%arg0: i32) -> (i32, i32) {
    %c0_i32 = arith.constant 0 : i32
    %c0_i32_0 = arith.constant 0 : i32
    %c0_i32_1 = arith.constant 0 : i32
    return %c0_i32, %c0_i32_0 : i32, i32
  }
  func.func @transform_10(%arg0: i32) -> (i32, i32) {
    %c0_i32 = arith.constant 0 : i32
    %c0_i32_0 = arith.constant 0 : i32
    %c0_i32_1 = arith.constant 0 : i32
    return %c0_i32, %c0_i32_0 : i32, i32
  }
  func.func @transform_11(%arg0: i32) -> (i32, i32) {
    %c0_i32 = arith.constant 0 : i32
    %c0_i32_0 = arith.constant 0 : i32
    return %arg0, %c0_i32 : i32, i32
  }
}

</mosaic_0001>

<llo_original>
// kernel: decoder_layer.1
$region0: #{decoder_layer.1}
  #allocation0 [shape = 'u32[]', space=smem, size = 0x4, offset = 0x4, fixed_abs, tag = 'smem constant byte address 0x4 - core index']
  #allocation1 [shape = 'u32[144,128]{1,0:T(1,128)}', space=vmem, size = 0x12000, scoped, tag = 'internal scratch']
  %s0 = inlined_call_operand.vmem [shape: f32[16,32], index: 0, kind: input, shape index: {}]
  %s1 = inlined_call_operand.vmem [shape: f32[16,32], index: 1, kind: input, shape index: {}]
  %s2 = inlined_call_operand.vmem [shape: bf16[32,64], index: 2, kind: input, shape index: {}]
  %s3 = inlined_call_operand.vmem [shape: bf16[32,64], index: 3, kind: input, shape index: {}]
  %s4 = inlined_call_operand.vmem [shape: bf16[64,32], index: 4, kind: input, shape index: {}]
  %s5 = inlined_call_operand.vmem [shape: bf16[32,64], index: 5, kind: input, shape index: {}]
  %s6 = inlined_call_operand.vmem [shape: bf16[32,64], index: 6, kind: input, shape index: {}]
  %s7 = inlined_call_operand.vmem [shape: bf16[64,32], index: 7, kind: input, shape index: {}]
  %s8 = inlined_call_operand.vmem [shape: bf16[32,64], index: 8, kind: input, shape index: {}]
  %s9 = inlined_call_operand.vmem [shape: bf16[64,32], index: 9, kind: input, shape index: {}]
  %s10 = inlined_call_operand.vmem [shape: f32[16,128], index: 10, kind: input, shape index: {}]
  %s11 = inlined_call_operand.vmem [shape: f32[16,32], index: 11, kind: output, shape index: {}]
  %s12 = sld [smem:[#allocation0]]
  $region77: #{decoder_layer.1} parent=0
    _
  %s14 = ssub.s32 1, %s12
  %s15 = scalar_select 0, %s14, %s12
  loop: start=0, step=1, limit=4
  $region2: #{decoder_layer.1} parent=0 // loop_pre_header
    _
  $region3: #{decoder_layer.1} parent=0 // loop_header
    %s17 = sphi 0, %s21
    %p18 = scmp.ge.s32.totalorder %s17, 4
    %s27 = sphi 0, %s29
    %s30 = sphi 0, %s27
    %s31 = sphi 0, %s30
    %s47 = sphi 0, %s31
    %s53 = sphi 0, %s55
    %s56 = sphi 0, %s53
    %s57 = sphi 0, %s56
    %s73 = sphi 0, %s57
    %s77 = sphi 0, %s77
    %s79 = sphi 0, %s77
    %s80 = sphi 0, %s79
    %s94 = sphi 0, %s80
    %s98 = sphi 0, %s98
    %s100 = sphi 0, %s98
    %s101 = sphi 0, %s100
    %s115 = sphi 0, %s101
    %s119 = sphi 0, %s119
    %s121 = sphi 0, %s119
    %s122 = sphi 0, %s121
    %s136 = sphi 0, %s122
    %s140 = sphi 0, %s140
    %s142 = sphi 0, %s140
    %s143 = sphi 0, %s142
    %s157 = sphi 0, %s143
    %s161 = sphi 0, %s161
    %s163 = sphi 0, %s161
    %s164 = sphi 0, %s163
    %s178 = sphi 0, %s164
    %s182 = sphi 0, %s182
    %s184 = sphi 0, %s182
    %s185 = sphi 0, %s184
    %s199 = sphi 0, %s185
    %s203 = sphi 0, %s203
    %s205 = sphi 0, %s203
    %s206 = sphi 0, %s205
    %s220 = sphi 0, %s206
    %s224 = sphi 0, %s224
    %s226 = sphi 0, %s224
    %s227 = sphi 0, %s226
    %s241 = sphi 0, %s227
    %s245 = sphi 0, %s245
    %s247 = sphi 0, %s245
    %s248 = sphi 0, %s247
    %s262 = sphi 0, %s248
    %s268 = sphi 0, %s270
    %s271 = sphi 0, %s268
    %s272 = sphi 0, %s271
    %s288 = sphi 0, %s272
  $region4: #{decoder_layer.1} parent=0 // loop_header_branch
    %20 = sbr.rel (%p18) target = $region8
  $region5: #{decoder_layer.1} parent=0 // loop_body
    %s22 = ssub.s32 %s17, 1
    %s23 = ssub.s32 %s17, 2
    %s24 = sadd.s32 %s17, 1
    %s25 = ssub.s32 %s17, %s24
    %p26 = scmp.eq.s32.totalorder %s25, 0
    %s28 = sadd.s32 %s27, 1
    %s29 = scalar_select %p26, %s27, %s28
    %p32 = pneg %p26
    %p33 = scmp.eq.s32.totalorder %s17, 1
    %p34 = por %p32, %p33
    %p35 = scmp.ne.s32.totalorder %s27, %s30
    %p36 = scmp.eq.s32.totalorder %s17, 0
    %p37 = por %p35, %p36
    %p38 = scmp.ne.s32.totalorder %s27, %s30
    %p39 = scmp.eq.s32.totalorder %s22, 1
    %p40 = por %p38, %p39
    %p41 = scmp.ne.s32.totalorder %s30, %s31
    %p42 = scmp.eq.s32.totalorder %s22, 0
    %p43 = por %p41, %p42
    %p44 = scmp.ne.s32.totalorder %s30, %s31
    %p45 = scmp.eq.s32.totalorder %s23, 1
    %p46 = por %p44, %p45
    %p48 = scmp.ne.s32.totalorder %s31, %s47
    %p49 = scmp.eq.s32.totalorder %s23, 0
    %p50 = por %p48, %p49
    %s51 = ssub.s32 %s17, %s24
    %p52 = scmp.eq.s32.totalorder %s51, 0
    %s54 = sadd.s32 %s53, 1
    %s55 = scalar_select %p52, %s53, %s54
    %p58 = pneg %p52
    %p59 = scmp.eq.s32.totalorder %s17, 1
    %p60 = por %p58, %p59
    %p61 = scmp.ne.s32.totalorder %s53, %s56
    %p62 = scmp.eq.s32.totalorder %s17, 0
    %p63 = por %p61, %p62
    %p64 = scmp.ne.s32.totalorder %s53, %s56
    %p65 = scmp.eq.s32.totalorder %s22, 1
    %p66 = por %p64, %p65
    %p67 = scmp.ne.s32.totalorder %s56, %s57
    %p68 = scmp.eq.s32.totalorder %s22, 0
    %p69 = por %p67, %p68
    %p70 = scmp.ne.s32.totalorder %s56, %s57
    %p71 = scmp.eq.s32.totalorder %s23, 1
    %p72 = por %p70, %p71
    %p74 = scmp.ne.s32.totalorder %s57, %s73
    %p75 = scmp.eq.s32.totalorder %s23, 0
    %p76 = por %p74, %p75
    %s78 = sadd.s32 %s77, 1
    %p81 = scmp.eq.s32.totalorder %s17, 1
    %p82 = scmp.ne.s32.totalorder %s77, %s79
    %p83 = scmp.eq.s32.totalorder %s17, 0
    %p84 = por %p82, %p83
    %p85 = scmp.ne.s32.totalorder %s77, %s79
    %p86 = scmp.eq.s32.totalorder %s22, 1
    %p87 = por %p85, %p86
    %p88 = scmp.ne.s32.totalorder %s79, %s80
    %p89 = scmp.eq.s32.totalorder %s22, 0
    %p90 = por %p88, %p89
    %p91 = scmp.ne.s32.totalorder %s79, %s80
    %p92 = scmp.eq.s32.totalorder %s23, 1
    %p93 = por %p91, %p92
    %p95 = scmp.ne.s32.totalorder %s80, %s94
    %p96 = scmp.eq.s32.totalorder %s23, 0
    %p97 = por %p95, %p96
    %s99 = sadd.s32 %s98, 1
    %p102 = scmp.eq.s32.totalorder %s17, 1
    %p103 = scmp.ne.s32.totalorder %s98, %s100
    %p104 = scmp.eq.s32.totalorder %s17, 0
    %p105 = por %p103, %p104
    %p106 = scmp.ne.s32.totalorder %s98, %s100
    %p107 = scmp.eq.s32.totalorder %s22, 1
    %p108 = por %p106, %p107
    %p109 = scmp.ne.s32.totalorder %s100, %s101
    %p110 = scmp.eq.s32.totalorder %s22, 0
    %p111 = por %p109, %p110
    %p112 = scmp.ne.s32.totalorder %s100, %s101
    %p113 = scmp.eq.s32.totalorder %s23, 1
    %p114 = por %p112, %p113
    %p116 = scmp.ne.s32.totalorder %s101, %s115
    %p117 = scmp.eq.s32.totalorder %s23, 0
    %p118 = por %p116, %p117
    %s120 = sadd.s32 %s119, 1
    %p123 = scmp.eq.s32.totalorder %s17, 1
    %p124 = scmp.ne.s32.totalorder %s119, %s121
    %p125 = scmp.eq.s32.totalorder %s17, 0
    %p126 = por %p124, %p125
    %p127 = scmp.ne.s32.totalorder %s119, %s121
    %p128 = scmp.eq.s32.totalorder %s22, 1
    %p129 = por %p127, %p128
    %p130 = scmp.ne.s32.totalorder %s121, %s122
    %p131 = scmp.eq.s32.totalorder %s22, 0
    %p132 = por %p130, %p131
    %p133 = scmp.ne.s32.totalorder %s121, %s122
    %p134 = scmp.eq.s32.totalorder %s23, 1
    %p135 = por %p133, %p134
    %p137 = scmp.ne.s32.totalorder %s122, %s136
    %p138 = scmp.eq.s32.totalorder %s23, 0
    %p139 = por %p137, %p138
    %s141 = sadd.s32 %s140, 1
    %p144 = scmp.eq.s32.totalorder %s17, 1
    %p145 = scmp.ne.s32.totalorder %s140, %s142
    %p146 = scmp.eq.s32.totalorder %s17, 0
    %p147 = por %p145, %p146
    %p148 = scmp.ne.s32.totalorder %s140, %s142
    %p149 = scmp.eq.s32.totalorder %s22, 1
    %p150 = por %p148, %p149
    %p151 = scmp.ne.s32.totalorder %s142, %s143
    %p152 = scmp.eq.s32.totalorder %s22, 0
    %p153 = por %p151, %p152
    %p154 = scmp.ne.s32.totalorder %s142, %s143
    %p155 = scmp.eq.s32.totalorder %s23, 1
    %p156 = por %p154, %p155
    %p158 = scmp.ne.s32.totalorder %s143, %s157
    %p159 = scmp.eq.s32.totalorder %s23, 0
    %p160 = por %p158, %p159
    %s162 = sadd.s32 %s161, 1
    %p165 = scmp.eq.s32.totalorder %s17, 1
    %p166 = scmp.ne.s32.totalorder %s161, %s163
    %p167 = scmp.eq.s32.totalorder %s17, 0
    %p168 = por %p166, %p167
    %p169 = scmp.ne.s32.totalorder %s161, %s163
    %p170 = scmp.eq.s32.totalorder %s22, 1
    %p171 = por %p169, %p170
    %p172 = scmp.ne.s32.totalorder %s163, %s164
    %p173 = scmp.eq.s32.totalorder %s22, 0
    %p174 = por %p172, %p173
    %p175 = scmp.ne.s32.totalorder %s163, %s164
    %p176 = scmp.eq.s32.totalorder %s23, 1
    %p177 = por %p175, %p176
    %p179 = scmp.ne.s32.totalorder %s164, %s178
    %p180 = scmp.eq.s32.totalorder %s23, 0
    %p181 = por %p179, %p180
    %s183 = sadd.s32 %s182, 1
    %p186 = scmp.eq.s32.totalorder %s17, 1
    %p187 = scmp.ne.s32.totalorder %s182, %s184
    %p188 = scmp.eq.s32.totalorder %s17, 0
    %p189 = por %p187, %p188
    %p190 = scmp.ne.s32.totalorder %s182, %s184
    %p191 = scmp.eq.s32.totalorder %s22, 1
    %p192 = por %p190, %p191
    %p193 = scmp.ne.s32.totalorder %s184, %s185
    %p194 = scmp.eq.s32.totalorder %s22, 0
    %p195 = por %p193, %p194
    %p196 = scmp.ne.s32.totalorder %s184, %s185
    %p197 = scmp.eq.s32.totalorder %s23, 1
    %p198 = por %p196, %p197
    %p200 = scmp.ne.s32.totalorder %s185, %s199
    %p201 = scmp.eq.s32.totalorder %s23, 0
    %p202 = por %p200, %p201
    %s204 = sadd.s32 %s203, 1
    %p207 = scmp.eq.s32.totalorder %s17, 1
    %p208 = scmp.ne.s32.totalorder %s203, %s205
    %p209 = scmp.eq.s32.totalorder %s17, 0
    %p210 = por %p208, %p209
    %p211 = scmp.ne.s32.totalorder %s203, %s205
    %p212 = scmp.eq.s32.totalorder %s22, 1
    %p213 = por %p211, %p212
    %p214 = scmp.ne.s32.totalorder %s205, %s206
    %p215 = scmp.eq.s32.totalorder %s22, 0
    %p216 = por %p214, %p215
    %p217 = scmp.ne.s32.totalorder %s205, %s206
    %p218 = scmp.eq.s32.totalorder %s23, 1
    %p219 = por %p217, %p218
    %p221 = scmp.ne.s32.totalorder %s206, %s220
    %p222 = scmp.eq.s32.totalorder %s23, 0
    %p223 = por %p221, %p222
    %s225 = sadd.s32 %s224, 1
    %p228 = scmp.eq.s32.totalorder %s17, 1
    %p229 = scmp.ne.s32.totalorder %s224, %s226
    %p230 = scmp.eq.s32.totalorder %s17, 0
    %p231 = por %p229, %p230
    %p232 = scmp.ne.s32.totalorder %s224, %s226
    %p233 = scmp.eq.s32.totalorder %s22, 1
    %p234 = por %p232, %p233
    %p235 = scmp.ne.s32.totalorder %s226, %s227
    %p236 = scmp.eq.s32.totalorder %s22, 0
    %p237 = por %p235, %p236
    %p238 = scmp.ne.s32.totalorder %s226, %s227
    %p239 = scmp.eq.s32.totalorder %s23, 1
    %p240 = por %p238, %p239
    %p242 = scmp.ne.s32.totalorder %s227, %s241
    %p243 = scmp.eq.s32.totalorder %s23, 0
    %p244 = por %p242, %p243
    %s246 = sadd.s32 %s245, 1
    %p249 = scmp.eq.s32.totalorder %s17, 1
    %p250 = scmp.ne.s32.totalorder %s245, %s247
    %p251 = scmp.eq.s32.totalorder %s17, 0
    %p252 = por %p250, %p251
    %p253 = scmp.ne.s32.totalorder %s245, %s247
    %p254 = scmp.eq.s32.totalorder %s22, 1
    %p255 = por %p253, %p254
    %p256 = scmp.ne.s32.totalorder %s247, %s248
    %p257 = scmp.eq.s32.totalorder %s22, 0
    %p258 = por %p256, %p257
    %p259 = scmp.ne.s32.totalorder %s247, %s248
    %p260 = scmp.eq.s32.totalorder %s23, 1
    %p261 = por %p259, %p260
    %p263 = scmp.ne.s32.totalorder %s248, %s262
    %p264 = scmp.eq.s32.totalorder %s23, 0
    %p265 = por %p263, %p264
    %s266 = ssub.s32 %s17, %s24
    %p267 = scmp.eq.s32.totalorder %s266, 0
    %s269 = sadd.s32 %s268, 1
    %s270 = scalar_select %p267, %s268, %s269
    %p273 = pneg %p267
    %p274 = scmp.eq.s32.totalorder %s17, 1
    %p275 = por %p273, %p274
    %p276 = scmp.ne.s32.totalorder %s268, %s271
    %p277 = scmp.eq.s32.totalorder %s17, 0
    %p278 = por %p276, %p277
    %p279 = scmp.ne.s32.totalorder %s268, %s271
    %p280 = scmp.eq.s32.totalorder %s22, 1
    %p281 = por %p279, %p280
    %p282 = scmp.ne.s32.totalorder %s271, %s272
    %p283 = scmp.eq.s32.totalorder %s22, 0
    %p284 = por %p282, %p283
    %p285 = scmp.ne.s32.totalorder %s271, %s272
    %p286 = scmp.eq.s32.totalorder %s23, 1
    %p287 = por %p285, %p286
    %p289 = scmp.ne.s32.totalorder %s272, %s288
    %p290 = scmp.eq.s32.totalorder %s23, 0
    %p291 = por %p289, %p290
    %p292 = scmp.le.s32.totalorder 1, %s17
    %p293 = scmp.lt.s32.totalorder %s17, 3
    %p294 = pnand %p292, %p293
    %p295 = pneg %p294
    // Predicated region
    $region9: #{decoder_layer.1} parent=5 // pred_check
      _
    $region10: #{decoder_layer.1} parent=5 // pred_check_branch
      %297 = sbr.rel (%p294) target = $region12
    $region11: #{decoder_layer.1} parent=5 // pred_region
      %s298 = ssub.s32 %s17, 1
      // Predicated region
      $region13: #{decoder_layer.1} parent=11 // pred_check
        %p299 = pneg %p90
      $region14: #{decoder_layer.1} parent=11 // pred_check_branch
        %301 = sbr.rel (%p299) target = $region16
      $region15: #{decoder_layer.1} parent=11 // pred_region
        _
      $region16: #{decoder_layer.1} parent=11 // pred_fallthru
        _
      // Predicated region
      $region17: #{decoder_layer.1} parent=11 // pred_check
        %p302 = pneg %p111
      $region18: #{decoder_layer.1} parent=11 // pred_check_branch
        %304 = sbr.rel (%p302) target = $region20
      $region19: #{decoder_layer.1} parent=11 // pred_region
        _
      $region20: #{decoder_layer.1} parent=11 // pred_fallthru
        _
      // Predicated region
      $region21: #{decoder_layer.1} parent=11 // pred_check
        %p305 = pneg %p132
      $region22: #{decoder_layer.1} parent=11 // pred_check_branch
        %307 = sbr.rel (%p305) target = $region24
      $region23: #{decoder_layer.1} parent=11 // pred_region
        _
      $region24: #{decoder_layer.1} parent=11 // pred_fallthru
        _
      // Predicated region
      $region25: #{decoder_layer.1} parent=11 // pred_check
        %p308 = pneg %p153
      $region26: #{decoder_layer.1} parent=11 // pred_check_branch
        %310 = sbr.rel (%p308) target = $region28
      $region27: #{decoder_layer.1} parent=11 // pred_region
        _
      $region28: #{decoder_layer.1} parent=11 // pred_fallthru
        _
      // Predicated region
      $region29: #{decoder_layer.1} parent=11 // pred_check
        %p311 = pneg %p174
      $region30: #{decoder_layer.1} parent=11 // pred_check_branch
        %313 = sbr.rel (%p311) target = $region32
      $region31: #{decoder_layer.1} parent=11 // pred_region
        _
      $region32: #{decoder_layer.1} parent=11 // pred_fallthru
        _
      // Predicated region
      $region33: #{decoder_layer.1} parent=11 // pred_check
        %p314 = pneg %p195
      $region34: #{decoder_layer.1} parent=11 // pred_check_branch
        %316 = sbr.rel (%p314) target = $region36
      $region35: #{decoder_layer.1} parent=11 // pred_region
        _
      $region36: #{decoder_layer.1} parent=11 // pred_fallthru
        _
      // Predicated region
      $region37: #{decoder_layer.1} parent=11 // pred_check
        %p317 = pneg %p216
      $region38: #{decoder_layer.1} parent=11 // pred_check_branch
        %319 = sbr.rel (%p317) target = $region40
      $region39: #{decoder_layer.1} parent=11 // pred_region
        _
      $region40: #{decoder_layer.1} parent=11 // pred_fallthru
        _
      // Predicated region
      $region41: #{decoder_layer.1} parent=11 // pred_check
        %p320 = pneg %p237
      $region42: #{decoder_layer.1} parent=11 // pred_check_branch
        %322 = sbr.rel (%p320) target = $region44
      $region43: #{decoder_layer.1} parent=11 // pred_region
        _
      $region44: #{decoder_layer.1} parent=11 // pred_fallthru
        _
      // Predicated region
      $region45: #{decoder_layer.1} parent=11 // pred_check
        %p323 = pneg %p258
      $region46: #{decoder_layer.1} parent=11 // pred_check_branch
        %325 = sbr.rel (%p323) target = $region48
      $region47: #{decoder_layer.1} parent=11 // pred_region
        _
      $region48: #{decoder_layer.1} parent=11 // pred_fallthru
        _
    $region12: #{decoder_layer.1} parent=5 // pred_fallthru
      _
    %p326 = scmp.lt.s32.totalorder %s17, 2
    // Predicated region
    $region49: #{decoder_layer.1} parent=5 // pred_check
      %p327 = pneg %p326
    $region50: #{decoder_layer.1} parent=5 // pred_check_branch
      %329 = sbr.rel (%p327) target = $region52
    $region51: #{decoder_layer.1} parent=5 // pred_region
      // Predicated region
      $region53: #{decoder_layer.1} parent=51 // pred_check
        %p330 = pneg %p37
      $region54: #{decoder_layer.1} parent=51 // pred_check_branch
        %332 = sbr.rel (%p330) target = $region56
      $region55: #{decoder_layer.1} parent=51 // pred_region
        %p333 = scmp.lt.s32.totalorder %s17, 1
        %s334 = scalar_select %p333, %s17, 1
        %s335 = smul.addr %s334, 8
        %s336 = scalar_lea.vmem %s0, %s335
      $region56: #{decoder_layer.1} parent=51 // pred_fallthru
        _
      // Predicated region
      $region57: #{decoder_layer.1} parent=51 // pred_check
        %p337 = pneg %p63
      $region58: #{decoder_layer.1} parent=51 // pred_check_branch
        %339 = sbr.rel (%p337) target = $region60
      $region59: #{decoder_layer.1} parent=51 // pred_region
        %p340 = scmp.lt.s32.totalorder %s17, 1
        %s341 = scalar_select %p340, %s17, 1
        %s342 = smul.addr %s341, 8
        %s343 = scalar_lea.vmem %s1, %s342
      $region60: #{decoder_layer.1} parent=51 // pred_fallthru
        _
    $region52: #{decoder_layer.1} parent=5 // pred_fallthru
      _
    %p344 = scmp.le.s32.totalorder 1, %s17
    %p345 = scmp.lt.s32.totalorder %s17, 3
    %p346 = pnand %p344, %p345
    %p347 = pneg %p346
    // Predicated region
    $region61: #{decoder_layer.1} parent=5 // pred_check
      _
    $region62: #{decoder_layer.1} parent=5 // pred_check_branch
      %349 = sbr.rel (%p346) target = $region64
    $region63: #{decoder_layer.1} parent=5 // pred_region
      %s350 = ssub.s32 %s17, 1
      %p351 = scmp.lt.s32.totalorder %s22, 1
      %s352 = scalar_select %p351, %s22, 1
      %s353 = smul.addr %s352, 8
      %s354 = scalar_lea.vmem %s0, %s353
      %p355 = pneg %p43
      %p356 = pneg %p40
      %p357 = scmp.lt.s32.totalorder %s22, 1
      %s358 = scalar_select %p357, %s22, 1
      %s359 = smul.addr %s358, 8
      %s360 = scalar_lea.vmem %s1, %s359
      %p361 = pneg %p69
      %p362 = pneg %p66
      %p363 = pneg %p90
      %p364 = pneg %p87
      %p365 = pneg %p111
      %p366 = pneg %p108
      %p367 = pneg %p132
      %p368 = pneg %p129
      %p369 = pneg %p153
      %p370 = pneg %p150
      %p371 = pneg %p174
      %p372 = pneg %p171
      %p373 = pneg %p195
      %p374 = pneg %p192
      %p375 = pneg %p216
      %p376 = pneg %p213
      %p377 = pneg %p237
      %p378 = pneg %p234
      %p379 = pneg %p258
      %p380 = pneg %p255
      %p381 = pneg %p284
      %p382 = pneg %p281
      %p383 = scmp.lt.s32.totalorder %s22, 1
      %s384 = scalar_select %p383, %s22, 1
      %s385 = smul.addr %s384, 8
      %s386 = scalar_lea.vmem %s11, %s385
      %p387 = scmp.lt.s32.totalorder %s22, 1
      %s388 = scalar_select %p387, %s22, 1
      %s389 = smul.addr %s388, 8
      %s390 = scalar_lea.vmem %s0, %s389
      %p391 = scmp.lt.s32.totalorder %s22, 1
      %s392 = scalar_select %p391, %s22, 1
      %s393 = smul.addr %s392, 8
      %s394 = scalar_lea.vmem %s1, %s393
      %p395 = scmp.lt.s32.totalorder %s22, 1
      %s396 = scalar_select %p395, %s22, 1
      %s397 = smul.addr %s396, 8
      %s398 = scalar_lea.vmem %s11, %s397
      %v400 = vld [vmem:[%s10] sm:$0x1]
      %v401 = vld [vmem:[%s10 + $0x1] sm:$0x1]
      %v402 = vld [vmem:[%s10 + $0x2] sm:$0x1]
      %v403 = vld [vmem:[%s10 + $0x3] sm:$0x1]
      %v404 = vld [vmem:[%s10 + $0x4] sm:$0x1]
      %v405 = vld [vmem:[%s10 + $0x5] sm:$0x1]
      %v406 = vld [vmem:[%s10 + $0x6] sm:$0x1]
      %v407 = vld [vmem:[%s10 + $0x7] sm:$0x1]
      %v408 = vld [vmem:[%s10 + $0x8] sm:$0x1]
      %v409 = vld [vmem:[%s10 + $0x9] sm:$0x1]
      %v410 = vld [vmem:[%s10 + $0xa] sm:$0x1]
      %v411 = vld [vmem:[%s10 + $0xb] sm:$0x1]
      %v412 = vld [vmem:[%s10 + $0xc] sm:$0x1]
      %v413 = vld [vmem:[%s10 + $0xd] sm:$0x1]
      %v414 = vlaneseq
      %v415 = vand.u32 %v414, 127
      %vm416 = vcmp.ge.s32.totalorder %v415, 0
      %vm417 = vcmp.lt.s32.totalorder %v415, 8
      %vm418 = vmand %vm416, %vm417
      %vm419 = vcmp.ge.s32.totalorder %v415, 8
      %vm420 = vcmp.lt.s32.totalorder %v415, 16
      %vm421 = vmand %vm419, %vm420
      %vm422 = vcmp.ge.s32.totalorder %v415, 16
      %vm423 = vcmp.lt.s32.totalorder %v415, 24
      %vm424 = vmand %vm422, %vm423
      %vm425 = vcmp.ge.s32.totalorder %v415, 24
      %vm426 = vcmp.lt.s32.totalorder %v415, 32
      %vm427 = vmand %vm425, %vm426
      %vm428 = vcmp.ge.s32.totalorder %v415, 32
      %vm429 = vcmp.lt.s32.totalorder %v415, 40
      %vm430 = vmand %vm428, %vm429
      %vm431 = vcmp.ge.s32.totalorder %v415, 40
      %vm432 = vcmp.lt.s32.totalorder %v415, 48
      %vm433 = vmand %vm431, %vm432
      %vm434 = vcmp.ge.s32.totalorder %v415, 48
      %vm435 = vcmp.lt.s32.totalorder %v415, 56
      %vm436 = vmand %vm434, %vm435
      %vm437 = vcmp.ge.s32.totalorder %v415, 56
      %vm438 = vcmp.lt.s32.totalorder %v415, 64
      %vm439 = vmand %vm437, %vm438
      %v440 = vld [vmem:[%s390] sm:$0xff]
      %v441 = vpack.c.bf16 %v440, %v440
      %v442 = vld [vmem:[%s2] sm:$0xf]
      %v443 = vld [vmem:[%s2 + $0x4] sm:$0xf]
      %v444 = vld [vmem:[%s2 + $0x8] sm:$0xf]
      %v445 = vld [vmem:[%s2 + $0xc] sm:$0xf]
      %v446 = vlaneseq
      %v447 = vshrl.u32 %v446, 7
      %v448 = vsub.s32 0, %v447
      %v449 = vrot.slane %v400, %v448
      %v454 = vunpack.c.l.b16 %v442
      %v455 = vunpack.c.l.b16 %v443
      %v456 = vunpack.c.l.b16 %v444
      %v457 = vunpack.c.l.b16 %v445
      %v458 = vpack.c.b16 %v455, %v454
      %v459 = vpack.c.b16 %v457, %v456
      %vm462 = vcmask 261120
      %v464 = vsel %vm462, %v441, 0
      %466 = vmatprep.subr.bf16.mxu0 0
      %467 = vmatpush1.bf16.msra.mxu0 %v458
      %468 = vmatprep.subr.bf16.mxu0 0
      %469 = vmatpush1.bf16.msra.mxu0 %v459
      %470 = vmatprep.subr.bf16.mxu0 0
      %471 = vmatpush1.bf16.msra.mxu0 0
      %472 = vmatprep.subr.bf16.mxu0 0
      %473 = vmatpush1.bf16.msra.mxu0 0
      %474 = vmatprep.subr.bf16.mxu0 0
      %475 = vmatpush1.bf16.msra.mxu0 0
      %476 = vmatprep.subr.bf16.mxu0 0
      %477 = vmatpush1.bf16.msra.mxu0 0
      %478 = vmatprep.subr.bf16.mxu0 0
      %479 = vmatpush1.bf16.msra.mxu0 0
      %480 = vmatprep.subr.bf16.mxu0 0
      %481 = vmatpush1.bf16.msra.mxu0 0
      %482 = vmatprep.subr.bf16.mxu0 0
      %483 = vmatpush1.bf16.msra.mxu0 0
      %484 = vmatprep.subr.bf16.mxu0 0
      %485 = vmatpush1.bf16.msra.mxu0 0
      %486 = vmatprep.subr.bf16.mxu0 0
      %487 = vmatpush1.bf16.msra.mxu0 0
      %488 = vmatprep.subr.bf16.mxu0 0
      %489 = vmatpush1.bf16.msra.mxu0 0
      %490 = vmatprep.subr.bf16.mxu0 0
      %491 = vmatpush1.bf16.msra.mxu0 0
      %492 = vmatprep.subr.bf16.mxu0 0
      %493 = vmatpush1.bf16.msra.mxu0 0
      %494 = vmatprep.subr.bf16.mxu0 0
      %495 = vmatpush1.bf16.msra.mxu0 0
      %496 = vmatprep.subr.bf16.mxu0 0
      %497 = vmatpush1.bf16.msra.mxu0 0
      %498 = vmatprep.mubr.bf16.mxu0 0
      %499 = vmatmul.mubr.bf16.gmra.mrb[0].mxu0 %v464
      %v500 = vpop.f32.mrb[0].mxu0
      %v501 = vadd.f32 %v449, %v500
      %v502 = vpop.f32.mrb[0].mxu0
      %v503 = vpop.f32.mrb[0].mxu0
      %v504 = vpop.f32.mrb[0].mxu0
      %505 = vdwg.mxu0
      %v506 = vld [vmem:[%s3] sm:$0xf]
      %v507 = vld [vmem:[%s3 + $0x4] sm:$0xf]
      %v508 = vld [vmem:[%s3 + $0x8] sm:$0xf]
      %v509 = vld [vmem:[%s3 + $0xc] sm:$0xf]
      %v510 = vlaneseq
      %v511 = vshrl.u32 %v510, 7
      %v512 = vsub.s32 0, %v511
      %v513 = vrot.slane %v401, %v512
      %v518 = vunpack.c.l.b16 %v506
      %v519 = vunpack.c.l.b16 %v507
      %v520 = vunpack.c.l.b16 %v508
      %v521 = vunpack.c.l.b16 %v509
      %v522 = vpack.c.b16 %v519, %v518
      %v523 = vpack.c.b16 %v521, %v520
      %526 = vmatprep.subr.bf16.mxu0 0
      %527 = vmatpush1.bf16.msra.mxu0 %v522
      %528 = vmatprep.subr.bf16.mxu0 0
      %529 = vmatpush1.bf16.msra.mxu0 %v523
      %530 = vmatprep.subr.bf16.mxu0 0
      %531 = vmatpush1.bf16.msra.mxu0 0
      %532 = vmatprep.subr.bf16.mxu0 0
      %533 = vmatpush1.bf16.msra.mxu0 0
      %534 = vmatprep.subr.bf16.mxu0 0
      %535 = vmatpush1.bf16.msra.mxu0 0
      %536 = vmatprep.subr.bf16.mxu0 0
      %537 = vmatpush1.bf16.msra.mxu0 0
      %538 = vmatprep.subr.bf16.mxu0 0
      %539 = vmatpush1.bf16.msra.mxu0 0
      %540 = vmatprep.subr.bf16.mxu0 0
      %541 = vmatpush1.bf16.msra.mxu0 0
      %542 = vmatprep.subr.bf16.mxu0 0
      %543 = vmatpush1.bf16.msra.mxu0 0
      %544 = vmatprep.subr.bf16.mxu0 0
      %545 = vmatpush1.bf16.msra.mxu0 0
      %546 = vmatprep.subr.bf16.mxu0 0
      %547 = vmatpush1.bf16.msra.mxu0 0
      %548 = vmatprep.subr.bf16.mxu0 0
      %549 = vmatpush1.bf16.msra.mxu0 0
      %550 = vmatprep.subr.bf16.mxu0 0
      %551 = vmatpush1.bf16.msra.mxu0 0
      %552 = vmatprep.subr.bf16.mxu0 0
      %553 = vmatpush1.bf16.msra.mxu0 0
      %554 = vmatprep.subr.bf16.mxu0 0
      %555 = vmatpush1.bf16.msra.mxu0 0
      %556 = vmatprep.subr.bf16.mxu0 0
      %557 = vmatpush1.bf16.msra.mxu0 0
      %558 = vmatprep.mubr.bf16.mxu0 0
      %559 = vmatmul.mubr.bf16.gmra.mrb[0].mxu0 %v464
      %v560 = vpop.f32.mrb[0].mxu0
      %v561 = vadd.f32 %v513, %v560
      %v562 = vpop.f32.mrb[0].mxu0
      %v563 = vpop.f32.mrb[0].mxu0
      %v564 = vpop.f32.mrb[0].mxu0
      %565 = vdwg.mxu0
      %v566 = vpack.c.bf16 %v501, %v501
      %v567 = vpack.c.bf16 %v561, %v561
      %v568 = vsel %vm418, 1, 0
      %vm569 = vcmp.eq.s32.totalorder %v568, 1
      %vm570 = vmpackc.low %vm569, %vm569
      %v571 = vsel %vm570, %v566, 0
      %v572 = vsel %vm570, %v567, 0
      %vm573 = vcmask 523264
      %v575 = vsel %vm573, %v571, 0
      %v578 = vsel %vm573, %v572, 0
      %580 = vmatprep.subr.bf16.mxu0 0
      %581 = vmatpush1.bf16.xpose.msra.mxu0 %v578
      %582 = vmatprep.subr.bf16.mxu0 0
      %583 = vmatpush1.bf16.xpose.msra.mxu0 0
      %584 = vmatprep.subr.bf16.mxu0 0
      %585 = vmatpush1.bf16.xpose.msra.mxu0 0
      %586 = vmatprep.subr.bf16.mxu0 0
      %587 = vmatpush1.bf16.xpose.msra.mxu0 0
      %588 = vmatprep.subr.bf16.mxu0 0
      %589 = vmatpush1.bf16.xpose.msra.mxu0 0
      %590 = vmatprep.subr.bf16.mxu0 0
      %591 = vmatpush1.bf16.xpose.msra.mxu0 0
      %592 = vmatprep.subr.bf16.mxu0 0
      %593 = vmatpush1.bf16.xpose.msra.mxu0 0
      %594 = vmatprep.subr.bf16.mxu0 0
      %595 = vmatpush1.bf16.xpose.msra.mxu0 0
      %596 = vmatprep.subr.bf16.mxu0 0
      %597 = vmatpush1.bf16.xpose.msra.mxu0 0
      %598 = vmatprep.subr.bf16.mxu0 0
      %599 = vmatpush1.bf16.xpose.msra.mxu0 0
      %600 = vmatprep.subr.bf16.mxu0 0
      %601 = vmatpush1.bf16.xpose.msra.mxu0 0
      %602 = vmatprep.subr.bf16.mxu0 0
      %603 = vmatpush1.bf16.xpose.msra.mxu0 0
      %604 = vmatprep.subr.bf16.mxu0 0
      %605 = vmatpush1.bf16.xpose.msra.mxu0 0
      %606 = vmatprep.subr.bf16.mxu0 0
      %607 = vmatpush1.bf16.xpose.msra.mxu0 0
      %608 = vmatprep.subr.bf16.mxu0 0
      %609 = vmatpush1.bf16.xpose.msra.mxu0 0
      %610 = vmatprep.subr.bf16.mxu0 0
      %611 = vmatpush1.bf16.xpose.msra.mxu0 0
      %612 = vmatprep.mubr.bf16.mxu0 0
      %613 = vmatmul.mubr.bf16.gmra.mrb[0].mxu0 %v575
      %v614 = vpop.f32.mrb[0].mxu0
      %v615 = vadd.f32 0.0, %v614
      %v616 = vpop.f32.mrb[0].mxu0
      %v617 = vpop.f32.mrb[0].mxu0
      %v618 = vpop.f32.mrb[0].mxu0
      %619 = vdwg.mxu0
      %vm620 = vcmask 64512
      %v621 = vsel %vm620, %v615, -inf
      %622 = vmax.xlane.f32.xlu0 %v621
      %v623 = vpop.xlane.xlu0 %622
      %v624 = vsub.f32 %v615, %v623
      %v625 = vmul.f32 %v624, 1.442695
      %v626 = vpow.pop %v625
      %v627 = vsel %vm620, %v626, 0.0
      %628 = vadd.xlane.f32.xlu0 %v627
      %v629 = vpop.xlane.xlu0 %628
      %v630 = vrcp.pop %v629
      %v631 = vmul.f32 %v626, %v630
      %v632 = vpack.c.bf16 %v631, %v631
      %v633 = vsel %vm430, 1, 0
      %vm634 = vcmp.eq.s32.totalorder %v633, 1
      %vm635 = vmpackc.low %vm634, %vm634
      %v636 = vsel %vm635, %v566, 0
      %v637 = vsel %vm421, 1, 0
      %vm638 = vcmp.eq.s32.totalorder %v637, 1
      %vm639 = vmpackc.low %vm638, %vm638
      %v640 = vsel %vm639, %v566, 0
      %v641 = vsel %vm639, %v567, 0
      %v643 = vsel %vm573, %v640, 0
      %v646 = vsel %vm573, %v641, 0
      %648 = vmatprep.subr.bf16.mxu0 0
      %649 = vmatpush1.bf16.xpose.msra.mxu0 %v646
      %650 = vmatprep.subr.bf16.mxu0 0
      %651 = vmatpush1.bf16.xpose.msra.mxu0 0
      %652 = vmatprep.subr.bf16.mxu0 0
      %653 = vmatpush1.bf16.xpose.msra.mxu0 0
      %654 = vmatprep.subr.bf16.mxu0 0
      %655 = vmatpush1.bf16.xpose.msra.mxu0 0
      %656 = vmatprep.subr.bf16.mxu0 0
      %657 = vmatpush1.bf16.xpose.msra.mxu0 0
      %658 = vmatprep.subr.bf16.mxu0 0
      %659 = vmatpush1.bf16.xpose.msra.mxu0 0
      %660 = vmatprep.subr.bf16.mxu0 0
      %661 = vmatpush1.bf16.xpose.msra.mxu0 0
      %662 = vmatprep.subr.bf16.mxu0 0
      %663 = vmatpush1.bf16.xpose.msra.mxu0 0
      %664 = vmatprep.subr.bf16.mxu0 0
      %665 = vmatpush1.bf16.xpose.msra.mxu0 0
      %666 = vmatprep.subr.bf16.mxu0 0
      %667 = vmatpush1.bf16.xpose.msra.mxu0 0
      %668 = vmatprep.subr.bf16.mxu0 0
      %669 = vmatpush1.bf16.xpose.msra.mxu0 0
      %670 = vmatprep.subr.bf16.mxu0 0
      %671 = vmatpush1.bf16.xpose.msra.mxu0 0
      %672 = vmatprep.subr.bf16.mxu0 0
      %673 = vmatpush1.bf16.xpose.msra.mxu0 0
      %674 = vmatprep.subr.bf16.mxu0 0
      %675 = vmatpush1.bf16.xpose.msra.mxu0 0
      %676 = vmatprep.subr.bf16.mxu0 0
      %677 = vmatpush1.bf16.xpose.msra.mxu0 0
      %678 = vmatprep.subr.bf16.mxu0 0
      %679 = vmatpush1.bf16.xpose.msra.mxu0 0
      %680 = vmatprep.mubr.bf16.mxu0 0
      %681 = vmatmul.mubr.bf16.gmra.mrb[0].mxu0 %v643
      %v682 = vpop.f32.mrb[0].mxu0
      %v683 = vadd.f32 0.0, %v682
      %v684 = vpop.f32.mrb[0].mxu0
      %v685 = vpop.f32.mrb[0].mxu0
      %v686 = vpop.f32.mrb[0].mxu0
      %687 = vdwg.mxu0
      %v688 = vsel %vm620, %v683, -inf
      %689 = vmax.xlane.f32.xlu0 %v688
      %v690 = vpop.xlane.xlu0 %689
      %v691 = vsub.f32 %v683, %v690
      %v692 = vmul.f32 %v691, 1.442695
      %v693 = vpow.pop %v692
      %v694 = vsel %vm620, %v693, 0.0
      %695 = vadd.xlane.f32.xlu0 %v694
      %v696 = vpop.xlane.xlu0 %695
      %v697 = vrcp.pop %v696
      %v698 = vmul.f32 %v693, %v697
      %v699 = vpack.c.bf16 %v698, %v698
      %v700 = vsel %vm433, 1, 0
      %vm701 = vcmp.eq.s32.totalorder %v700, 1
      %vm702 = vmpackc.low %vm701, %vm701
      %v703 = vsel %vm702, %v566, 0
      %v705 = vsel %vm620, %v699, 0
      %vm707 = vcmask 1043456
      %v709 = vsel %vm707, %v703, 0
      %711 = vmatprep.subr.bf16.mxu0 0
      %712 = vmatpush1.bf16.msra.mxu0 %v709
      %713 = vmatprep.subr.bf16.mxu0 0
      %714 = vmatpush1.bf16.msra.mxu0 0
      %715 = vmatprep.subr.bf16.mxu0 0
      %716 = vmatpush1.bf16.msra.mxu0 0
      %717 = vmatprep.subr.bf16.mxu0 0
      %718 = vmatpush1.bf16.msra.mxu0 0
      %719 = vmatprep.subr.bf16.mxu0 0
      %720 = vmatpush1.bf16.msra.mxu0 0
      %721 = vmatprep.subr.bf16.mxu0 0
      %722 = vmatpush1.bf16.msra.mxu0 0
      %723 = vmatprep.subr.bf16.mxu0 0
      %724 = vmatpush1.bf16.msra.mxu0 0
      %725 = vmatprep.subr.bf16.mxu0 0
      %726 = vmatpush1.bf16.msra.mxu0 0
      %727 = vmatprep.subr.bf16.mxu0 0
      %728 = vmatpush1.bf16.msra.mxu0 0
      %729 = vmatprep.subr.bf16.mxu0 0
      %730 = vmatpush1.bf16.msra.mxu0 0
      %731 = vmatprep.subr.bf16.mxu0 0
      %732 = vmatpush1.bf16.msra.mxu0 0
      %733 = vmatprep.subr.bf16.mxu0 0
      %734 = vmatpush1.bf16.msra.mxu0 0
      %735 = vmatprep.subr.bf16.mxu0 0
      %736 = vmatpush1.bf16.msra.mxu0 0
      %737 = vmatprep.subr.bf16.mxu0 0
      %738 = vmatpush1.bf16.msra.mxu0 0
      %739 = vmatprep.subr.bf16.mxu0 0
      %740 = vmatpush1.bf16.msra.mxu0 0
      %741 = vmatprep.subr.bf16.mxu0 0
      %742 = vmatpush1.bf16.msra.mxu0 0
      %743 = vmatprep.mubr.bf16.mxu0 0
      %744 = vmatmul.mubr.bf16.gmra.mrb[0].mxu0 %v705
      %v745 = vpop.f32.mrb[0].mxu0
      %v746 = vadd.f32 0.0, %v745
      %v747 = vpop.f32.mrb[0].mxu0
      %v748 = vpop.f32.mrb[0].mxu0
      %v749 = vpop.f32.mrb[0].mxu0
      %750 = vdwg.mxu0
      %v752 = vsel %vm620, %v632, 0
      %v755 = vsel %vm707, %v636, 0
      %757 = vmatprep.subr.bf16.mxu0 0
      %758 = vmatpush1.bf16.msra.mxu0 %v755
      %759 = vmatprep.subr.bf16.mxu0 0
      %760 = vmatpush1.bf16.msra.mxu0 0
      %761 = vmatprep.subr.bf16.mxu0 0
      %762 = vmatpush1.bf16.msra.mxu0 0
      %763 = vmatprep.subr.bf16.mxu0 0
      %764 = vmatpush1.bf16.msra.mxu0 0
      %765 = vmatprep.subr.bf16.mxu0 0
      %766 = vmatpush1.bf16.msra.mxu0 0
      %767 = vmatprep.subr.bf16.mxu0 0
      %768 = vmatpush1.bf16.msra.mxu0 0
      %769 = vmatprep.subr.bf16.mxu0 0
      %770 = vmatpush1.bf16.msra.mxu0 0
      %771 = vmatprep.subr.bf16.mxu0 0
      %772 = vmatpush1.bf16.msra.mxu0 0
      %773 = vmatprep.subr.bf16.mxu0 0
      %774 = vmatpush1.bf16.msra.mxu0 0
      %775 = vmatprep.subr.bf16.mxu0 0
      %776 = vmatpush1.bf16.msra.mxu0 0
      %777 = vmatprep.subr.bf16.mxu0 0
      %778 = vmatpush1.bf16.msra.mxu0 0
      %779 = vmatprep.subr.bf16.mxu0 0
      %780 = vmatpush1.bf16.msra.mxu0 0
      %781 = vmatprep.subr.bf16.mxu0 0
      %782 = vmatpush1.bf16.msra.mxu0 0
      %783 = vmatprep.subr.bf16.mxu0 0
      %784 = vmatpush1.bf16.msra.mxu0 0
      %785 = vmatprep.subr.bf16.mxu0 0
      %786 = vmatpush1.bf16.msra.mxu0 0
      %787 = vmatprep.subr.bf16.mxu0 0
      %788 = vmatpush1.bf16.msra.mxu0 0
      %789 = vmatprep.mubr.bf16.mxu0 0
      %790 = vmatmul.mubr.bf16.gmra.mrb[0].mxu0 %v752
      %v791 = vpop.f32.mrb[0].mxu0
      %v792 = vadd.f32 %v746, %v791
      %v793 = vpop.f32.mrb[0].mxu0
      %v794 = vpop.f32.mrb[0].mxu0
      %v795 = vpop.f32.mrb[0].mxu0
      %796 = vdwg.mxu0
      %v797 = vsel %vm424, 1, 0
      %vm798 = vcmp.eq.s32.totalorder %v797, 1
      %vm799 = vmpackc.low %vm798, %vm798
      %v800 = vsel %vm799, %v566, 0
      %v801 = vsel %vm799, %v567, 0
      %v803 = vsel %vm573, %v800, 0
      %v806 = vsel %vm573, %v801, 0
      %808 = vmatprep.subr.bf16.mxu0 0
      %809 = vmatpush1.bf16.xpose.msra.mxu0 %v806
      %810 = vmatprep.subr.bf16.mxu0 0
      %811 = vmatpush1.bf16.xpose.msra.mxu0 0
      %812 = vmatprep.subr.bf16.mxu0 0
      %813 = vmatpush1.bf16.xpose.msra.mxu0 0
      %814 = vmatprep.subr.bf16.mxu0 0
      %815 = vmatpush1.bf16.xpose.msra.mxu0 0
      %816 = vmatprep.subr.bf16.mxu0 0
      %817 = vmatpush1.bf16.xpose.msra.mxu0 0
      %818 = vmatprep.subr.bf16.mxu0 0
      %819 = vmatpush1.bf16.xpose.msra.mxu0 0
      %820 = vmatprep.subr.bf16.mxu0 0
      %821 = vmatpush1.bf16.xpose.msra.mxu0 0
      %822 = vmatprep.subr.bf16.mxu0 0
      %823 = vmatpush1.bf16.xpose.msra.mxu0 0
      %824 = vmatprep.subr.bf16.mxu0 0
      %825 = vmatpush1.bf16.xpose.msra.mxu0 0
      %826 = vmatprep.subr.bf16.mxu0 0
      %827 = vmatpush1.bf16.xpose.msra.mxu0 0
      %828 = vmatprep.subr.bf16.mxu0 0
      %829 = vmatpush1.bf16.xpose.msra.mxu0 0
      %830 = vmatprep.subr.bf16.mxu0 0
      %831 = vmatpush1.bf16.xpose.msra.mxu0 0
      %832 = vmatprep.subr.bf16.mxu0 0
      %833 = vmatpush1.bf16.xpose.msra.mxu0 0
      %834 = vmatprep.subr.bf16.mxu0 0
      %835 = vmatpush1.bf16.xpose.msra.mxu0 0
      %836 = vmatprep.subr.bf16.mxu0 0
      %837 = vmatpush1.bf16.xpose.msra.mxu0 0
      %838 = vmatprep.subr.bf16.mxu0 0
      %839 = vmatpush1.bf16.xpose.msra.mxu0 0
      %840 = vmatprep.mubr.bf16.mxu0 0
      %841 = vmatmul.mubr.bf16.gmra.mrb[0].mxu0 %v803
      %v842 = vpop.f32.mrb[0].mxu0
      %v843 = vadd.f32 0.0, %v842
      %v844 = vpop.f32.mrb[0].mxu0
      %v845 = vpop.f32.mrb[0].mxu0
      %v846 = vpop.f32.mrb[0].mxu0
      %847 = vdwg.mxu0
      %v848 = vsel %vm620, %v843, -inf
      %849 = vmax.xlane.f32.xlu0 %v848
      %v850 = vpop.xlane.xlu0 %849
      %v851 = vsub.f32 %v843, %v850
      %v852 = vmul.f32 %v851, 1.442695
      %v853 = vpow.pop %v852
      %v854 = vsel %vm620, %v853, 0.0
      %855 = vadd.xlane.f32.xlu0 %v854
      %v856 = vpop.xlane.xlu0 %855
      %v857 = vrcp.pop %v856
      %v858 = vmul.f32 %v853, %v857
      %v859 = vpack.c.bf16 %v858, %v858
      %v860 = vsel %vm436, 1, 0
      %vm861 = vcmp.eq.s32.totalorder %v860, 1
      %vm862 = vmpackc.low %vm861, %vm861
      %v863 = vsel %vm862, %v566, 0
      %v865 = vsel %vm620, %v859, 0
      %v868 = vsel %vm707, %v863, 0
      %870 = vmatprep.subr.bf16.mxu0 0
      %871 = vmatpush1.bf16.msra.mxu0 %v868
      %872 = vmatprep.subr.bf16.mxu0 0
      %873 = vmatpush1.bf16.msra.mxu0 0
      %874 = vmatprep.subr.bf16.mxu0 0
      %875 = vmatpush1.bf16.msra.mxu0 0
      %876 = vmatprep.subr.bf16.mxu0 0
      %877 = vmatpush1.bf16.msra.mxu0 0
      %878 = vmatprep.subr.bf16.mxu0 0
      %879 = vmatpush1.bf16.msra.mxu0 0
      %880 = vmatprep.subr.bf16.mxu0 0
      %881 = vmatpush1.bf16.msra.mxu0 0
      %882 = vmatprep.subr.bf16.mxu0 0
      %883 = vmatpush1.bf16.msra.mxu0 0
      %884 = vmatprep.subr.bf16.mxu0 0
      %885 = vmatpush1.bf16.msra.mxu0 0
      %886 = vmatprep.subr.bf16.mxu0 0
      %887 = vmatpush1.bf16.msra.mxu0 0
      %888 = vmatprep.subr.bf16.mxu0 0
      %889 = vmatpush1.bf16.msra.mxu0 0
      %890 = vmatprep.subr.bf16.mxu0 0
      %891 = vmatpush1.bf16.msra.mxu0 0
      %892 = vmatprep.subr.bf16.mxu0 0
      %893 = vmatpush1.bf16.msra.mxu0 0
      %894 = vmatprep.subr.bf16.mxu0 0
      %895 = vmatpush1.bf16.msra.mxu0 0
      %896 = vmatprep.subr.bf16.mxu0 0
      %897 = vmatpush1.bf16.msra.mxu0 0
      %898 = vmatprep.subr.bf16.mxu0 0
      %899 = vmatpush1.bf16.msra.mxu0 0
      %900 = vmatprep.subr.bf16.mxu0 0
      %901 = vmatpush1.bf16.msra.mxu0 0
      %902 = vmatprep.mubr.bf16.mxu0 0
      %903 = vmatmul.mubr.bf16.gmra.mrb[0].mxu0 %v865
      %v904 = vpop.f32.mrb[0].mxu0
      %v905 = vadd.f32 0.0, %v904
      %v906 = vpop.f32.mrb[0].mxu0
      %v907 = vpop.f32.mrb[0].mxu0
      %v908 = vpop.f32.mrb[0].mxu0
      %909 = vdwg.mxu0
      %v910 = vadd.f32 %v792, %v905
      %v911 = vsel %vm427, 1, 0
      %vm912 = vcmp.eq.s32.totalorder %v911, 1
      %vm913 = vmpackc.low %vm912, %vm912
      %v914 = vsel %vm913, %v566, 0
      %v915 = vsel %vm913, %v567, 0
      %v917 = vsel %vm573, %v914, 0
      %v920 = vsel %vm573, %v915, 0
      %922 = vmatprep.subr.bf16.mxu0 0
      %923 = vmatpush1.bf16.xpose.msra.mxu0 %v920
      %924 = vmatprep.subr.bf16.mxu0 0
      %925 = vmatpush1.bf16.xpose.msra.mxu0 0
      %926 = vmatprep.subr.bf16.mxu0 0
      %927 = vmatpush1.bf16.xpose.msra.mxu0 0
      %928 = vmatprep.subr.bf16.mxu0 0
      %929 = vmatpush1.bf16.xpose.msra.mxu0 0
      %930 = vmatprep.subr.bf16.mxu0 0
      %931 = vmatpush1.bf16.xpose.msra.mxu0 0
      %932 = vmatprep.subr.bf16.mxu0 0
      %933 = vmatpush1.bf16.xpose.msra.mxu0 0
      %934 = vmatprep.subr.bf16.mxu0 0
      %935 = vmatpush1.bf16.xpose.msra.mxu0 0
      %936 = vmatprep.subr.bf16.mxu0 0
      %937 = vmatpush1.bf16.xpose.msra.mxu0 0
      %938 = vmatprep.subr.bf16.mxu0 0
      %939 = vmatpush1.bf16.xpose.msra.mxu0 0
      %940 = vmatprep.subr.bf16.mxu0 0
      %941 = vmatpush1.bf16.xpose.msra.mxu0 0
      %942 = vmatprep.subr.bf16.mxu0 0
      %943 = vmatpush1.bf16.xpose.msra.mxu0 0
      %944 = vmatprep.subr.bf16.mxu0 0
      %945 = vmatpush1.bf16.xpose.msra.mxu0 0
      %946 = vmatprep.subr.bf16.mxu0 0
      %947 = vmatpush1.bf16.xpose.msra.mxu0 0
      %948 = vmatprep.subr.bf16.mxu0 0
      %949 = vmatpush1.bf16.xpose.msra.mxu0 0
      %950 = vmatprep.subr.bf16.mxu0 0
      %951 = vmatpush1.bf16.xpose.msra.mxu0 0
      %952 = vmatprep.subr.bf16.mxu0 0
      %953 = vmatpush1.bf16.xpose.msra.mxu0 0
      %954 = vmatprep.mubr.bf16.mxu0 0
      %955 = vmatmul.mubr.bf16.gmra.mrb[0].mxu0 %v917
      %v956 = vpop.f32.mrb[0].mxu0
      %v957 = vadd.f32 0.0, %v956
      %v958 = vpop.f32.mrb[0].mxu0
      %v959 = vpop.f32.mrb[0].mxu0
      %v960 = vpop.f32.mrb[0].mxu0
      %961 = vdwg.mxu0
      %v962 = vsel %vm620, %v957, -inf
      %963 = vmax.xlane.f32.xlu0 %v962
      %v964 = vpop.xlane.xlu0 %963
      %v965 = vsub.f32 %v957, %v964
      %v966 = vmul.f32 %v965, 1.442695
      %v967 = vpow.pop %v966
      %v968 = vsel %vm620, %v967, 0.0
      %969 = vadd.xlane.f32.xlu0 %v968
      %v970 = vpop.xlane.xlu0 %969
      %v971 = vrcp.pop %v970
      %v972 = vmul.f32 %v967, %v971
      %v973 = vpack.c.bf16 %v972, %v972
      %v974 = vsel %vm439, 1, 0
      %vm975 = vcmp.eq.s32.totalorder %v974, 1
      %vm976 = vmpackc.low %vm975, %vm975
      %v977 = vsel %vm976, %v566, 0
      %v979 = vsel %vm620, %v973, 0
      %v982 = vsel %vm707, %v977, 0
      %984 = vmatprep.subr.bf16.mxu0 0
      %985 = vmatpush1.bf16.msra.mxu0 %v982
      %986 = vmatprep.subr.bf16.mxu0 0
      %987 = vmatpush1.bf16.msra.mxu0 0
      %988 = vmatprep.subr.bf16.mxu0 0
      %989 = vmatpush1.bf16.msra.mxu0 0
      %990 = vmatprep.subr.bf16.mxu0 0
      %991 = vmatpush1.bf16.msra.mxu0 0
      %992 = vmatprep.subr.bf16.mxu0 0
      %993 = vmatpush1.bf16.msra.mxu0 0
      %994 = vmatprep.subr.bf16.mxu0 0
      %995 = vmatpush1.bf16.msra.mxu0 0
      %996 = vmatprep.subr.bf16.mxu0 0
      %997 = vmatpush1.bf16.msra.mxu0 0
      %998 = vmatprep.subr.bf16.mxu0 0
      %999 = vmatpush1.bf16.msra.mxu0 0
      %1000 = vmatprep.subr.bf16.mxu0 0
      %1001 = vmatpush1.bf16.msra.mxu0 0
      %1002 = vmatprep.subr.bf16.mxu0 0
      %1003 = vmatpush1.bf16.msra.mxu0 0
      %1004 = vmatprep.subr.bf16.mxu0 0
      %1005 = vmatpush1.bf16.msra.mxu0 0
      %1006 = vmatprep.subr.bf16.mxu0 0
      %1007 = vmatpush1.bf16.msra.mxu0 0
      %1008 = vmatprep.subr.bf16.mxu0 0
      %1009 = vmatpush1.bf16.msra.mxu0 0
      %1010 = vmatprep.subr.bf16.mxu0 0
      %1011 = vmatpush1.bf16.msra.mxu0 0
      %1012 = vmatprep.subr.bf16.mxu0 0
      %1013 = vmatpush1.bf16.msra.mxu0 0
      %1014 = vmatprep.subr.bf16.mxu0 0
      %1015 = vmatpush1.bf16.msra.mxu0 0
      %1016 = vmatprep.mubr.bf16.mxu0 0
      %1017 = vmatmul.mubr.bf16.gmra.mrb[0].mxu0 %v979
      %v1018 = vpop.f32.mrb[0].mxu0
      %v1019 = vadd.f32 0.0, %v1018
      %v1020 = vpop.f32.mrb[0].mxu0
      %v1021 = vpop.f32.mrb[0].mxu0
      %v1022 = vpop.f32.mrb[0].mxu0
      %1023 = vdwg.mxu0
      %v1024 = vadd.f32 %v910, %v1019
      %v1025 = vpack.c.bf16 %v1024, %v1024
      %v1026 = vld [vmem:[%s4] sm:$0xf]
      %v1027 = vld [vmem:[%s4 + $0x4] sm:$0xf]
      %v1028 = vld [vmem:[%s4 + $0x8] sm:$0xf]
      %v1029 = vld [vmem:[%s4 + $0xc] sm:$0xf]
      %v1030 = vld [vmem:[%s4 + $0x10] sm:$0xf]
      %v1031 = vld [vmem:[%s4 + $0x14] sm:$0xf]
      %v1032 = vld [vmem:[%s4 + $0x18] sm:$0xf]
      %v1033 = vld [vmem:[%s4 + $0x1c] sm:$0xf]
      %v1034 = vlaneseq
      %v1035 = vshrl.u32 %v1034, 7
      %v1036 = vsub.s32 0, %v1035
      %v1037 = vrot.slane %v402, %v1036
      %v1046 = vunpack.c.l.b16 %v1026
      %v1047 = vunpack.c.l.b16 %v1027
      %v1048 = vunpack.c.l.b16 %v1028
      %v1049 = vunpack.c.l.b16 %v1029
      %v1050 = vunpack.c.l.b16 %v1030
      %v1051 = vunpack.c.l.b16 %v1031
      %v1052 = vunpack.c.l.b16 %v1032
      %v1053 = vunpack.c.l.b16 %v1033
      %v1054 = vpack.c.b16 %v1047, %v1046
      %v1055 = vpack.c.b16 %v1049, %v1048
      %v1056 = vpack.c.b16 %v1051, %v1050
      %v1057 = vpack.c.b16 %v1053, %v1052
      %v1063 = vsel %vm573, %v1025, 0
      %1065 = vmatprep.subr.bf16.mxu0 0
      %1066 = vmatpush1.bf16.msra.mxu0 %v1054
      %1067 = vmatprep.subr.bf16.mxu0 0
      %1068 = vmatpush1.bf16.msra.mxu0 %v1055
      %1069 = vmatprep.subr.bf16.mxu0 0
      %1070 = vmatpush1.bf16.msra.mxu0 %v1056
      %1071 = vmatprep.subr.bf16.mxu0 0
      %1072 = vmatpush1.bf16.msra.mxu0 %v1057
      %1073 = vmatprep.subr.bf16.mxu0 0
      %1074 = vmatpush1.bf16.msra.mxu0 0
      %1075 = vmatprep.subr.bf16.mxu0 0
      %1076 = vmatpush1.bf16.msra.mxu0 0
      %1077 = vmatprep.subr.bf16.mxu0 0
      %1078 = vmatpush1.bf16.msra.mxu0 0
      %1079 = vmatprep.subr.bf16.mxu0 0
      %1080 = vmatpush1.bf16.msra.mxu0 0
      %1081 = vmatprep.subr.bf16.mxu0 0
      %1082 = vmatpush1.bf16.msra.mxu0 0
      %1083 = vmatprep.subr.bf16.mxu0 0
      %1084 = vmatpush1.bf16.msra.mxu0 0
      %1085 = vmatprep.subr.bf16.mxu0 0
      %1086 = vmatpush1.bf16.msra.mxu0 0
      %1087 = vmatprep.subr.bf16.mxu0 0
      %1088 = vmatpush1.bf16.msra.mxu0 0
      %1089 = vmatprep.subr.bf16.mxu0 0
      %1090 = vmatpush1.bf16.msra.mxu0 0
      %1091 = vmatprep.subr.bf16.mxu0 0
      %1092 = vmatpush1.bf16.msra.mxu0 0
      %1093 = vmatprep.subr.bf16.mxu0 0
      %1094 = vmatpush1.bf16.msra.mxu0 0
      %1095 = vmatprep.subr.bf16.mxu0 0
      %1096 = vmatpush1.bf16.msra.mxu0 0
      %1097 = vmatprep.mubr.bf16.mxu0 0
      %1098 = vmatmul.mubr.bf16.gmra.mrb[0].mxu0 %v1063
      %v1099 = vpop.f32.mrb[0].mxu0
      %v1100 = vadd.f32 %v1037, %v1099
      %v1101 = vpop.f32.mrb[0].mxu0
      %v1102 = vpop.f32.mrb[0].mxu0
      %v1103 = vpop.f32.mrb[0].mxu0
      %1104 = vdwg.mxu0
      %v1105 = vadd.f32 %v440, %v1100
      %v1106 = vsel %vm462, %v1105, 0.0
      %1107 = vadd.xlane.f32.xlu0 %v1106
      %v1108 = vpop.xlane.xlu0 %1107
      %v1109 = vrcp.pop 32.0
      %v1110 = vmul.f32 %v1108, %v1109
      %v1111 = vmul.f32 %v1105, %v1105
      %v1112 = vsel %vm462, %v1111, 0.0
      %1113 = vadd.xlane.f32.xlu0 %v1112
      %v1114 = vpop.xlane.xlu0 %1113
      %v1115 = vmul.f32 %v1114, %v1109
      %v1116 = vmul.f32 %v1110, %v1110
      %v1117 = vsub.f32 %v1115, %v1116
      %v1118 = vadd.f32 %v1117, 1e-05
      %v1119 = vrsqrt.pop %v1118
      %v1120 = vsub.f32 %v1105, %v1110
      %v1121 = vmul.f32 %v1120, %v1119
      %v1122 = vlaneseq
      %v1123 = vshrl.u32 %v1122, 7
      %v1124 = vsub.s32 0, %v1123
      %v1125 = vrot.slane %v403, %v1124
      %v1126 = vmul.f32 %v1121, %v1125
      %v1127 = vlaneseq
      %v1128 = vshrl.u32 %v1127, 7
      %v1129 = vsub.s32 0, %v1128
      %v1130 = vrot.slane %v404, %v1129
      %v1131 = vadd.f32 %v1126, %v1130
      %v1132 = vpack.c.bf16 %v1131, %v1131
      %v1133 = vld [vmem:[%s394] sm:$0xff]
      %v1134 = vpack.c.bf16 %v1133, %v1133
      %v1135 = vld [vmem:[%s5] sm:$0xf]
      %v1136 = vld [vmem:[%s5 + $0x4] sm:$0xf]
      %v1137 = vld [vmem:[%s5 + $0x8] sm:$0xf]
      %v1138 = vld [vmem:[%s5 + $0xc] sm:$0xf]
      %v1139 = vlaneseq
      %v1140 = vshrl.u32 %v1139, 7
      %v1141 = vsub.s32 0, %v1140
      %v1142 = vrot.slane %v405, %v1141
      %v1147 = vunpack.c.l.b16 %v1135
      %v1148 = vunpack.c.l.b16 %v1136
      %v1149 = vunpack.c.l.b16 %v1137
      %v1150 = vunpack.c.l.b16 %v1138
      %v1151 = vpack.c.b16 %v1148, %v1147
      %v1152 = vpack.c.b16 %v1150, %v1149
      %v1156 = vsel %vm462, %v1132, 0
      %1158 = vmatprep.subr.bf16.mxu0 0
      %1159 = vmatpush1.bf16.msra.mxu0 %v1151
      %1160 = vmatprep.subr.bf16.mxu0 0
      %1161 = vmatpush1.bf16.msra.mxu0 %v1152
      %1162 = vmatprep.subr.bf16.mxu0 0
      %1163 = vmatpush1.bf16.msra.mxu0 0
      %1164 = vmatprep.subr.bf16.mxu0 0
      %1165 = vmatpush1.bf16.msra.mxu0 0
      %1166 = vmatprep.subr.bf16.mxu0 0
      %1167 = vmatpush1.bf16.msra.mxu0 0
      %1168 = vmatprep.subr.bf16.mxu0 0
      %1169 = vmatpush1.bf16.msra.mxu0 0
      %1170 = vmatprep.subr.bf16.mxu0 0
      %1171 = vmatpush1.bf16.msra.mxu0 0
      %1172 = vmatprep.subr.bf16.mxu0 0
      %1173 = vmatpush1.bf16.msra.mxu0 0
      %1174 = vmatprep.subr.bf16.mxu0 0
      %1175 = vmatpush1.bf16.msra.mxu0 0
      %1176 = vmatprep.subr.bf16.mxu0 0
      %1177 = vmatpush1.bf16.msra.mxu0 0
      %1178 = vmatprep.subr.bf16.mxu0 0
      %1179 = vmatpush1.bf16.msra.mxu0 0
      %1180 = vmatprep.subr.bf16.mxu0 0
      %1181 = vmatpush1.bf16.msra.mxu0 0
      %1182 = vmatprep.subr.bf16.mxu0 0
      %1183 = vmatpush1.bf16.msra.mxu0 0
      %1184 = vmatprep.subr.bf16.mxu0 0
      %1185 = vmatpush1.bf16.msra.mxu0 0
      %1186 = vmatprep.subr.bf16.mxu0 0
      %1187 = vmatpush1.bf16.msra.mxu0 0
      %1188 = vmatprep.subr.bf16.mxu0 0
      %1189 = vmatpush1.bf16.msra.mxu0 0
      %1190 = vmatprep.mubr.bf16.mxu0 0
      %1191 = vmatmul.mubr.bf16.gmra.mrb[0].mxu0 %v1156
      %v1192 = vpop.f32.mrb[0].mxu0
      %v1193 = vadd.f32 %v1142, %v1192
      %v1194 = vpop.f32.mrb[0].mxu0
      %v1195 = vpop.f32.mrb[0].mxu0
      %v1196 = vpop.f32.mrb[0].mxu0
      %1197 = vdwg.mxu0
      %v1198 = vld [vmem:[%s6] sm:$0xf]
      %v1199 = vld [vmem:[%s6 + $0x4] sm:$0xf]
      %v1200 = vld [vmem:[%s6 + $0x8] sm:$0xf]
      %v1201 = vld [vmem:[%s6 + $0xc] sm:$0xf]
      %v1202 = vlaneseq
      %v1203 = vshrl.u32 %v1202, 7
      %v1204 = vsub.s32 0, %v1203
      %v1205 = vrot.slane %v406, %v1204
      %v1210 = vunpack.c.l.b16 %v1198
      %v1211 = vunpack.c.l.b16 %v1199
      %v1212 = vunpack.c.l.b16 %v1200
      %v1213 = vunpack.c.l.b16 %v1201
      %v1214 = vpack.c.b16 %v1211, %v1210
      %v1215 = vpack.c.b16 %v1213, %v1212
      %v1219 = vsel %vm462, %v1134, 0
      %1221 = vmatprep.subr.bf16.mxu0 0
      %1222 = vmatpush1.bf16.msra.mxu0 %v1214
      %1223 = vmatprep.subr.bf16.mxu0 0
      %1224 = vmatpush1.bf16.msra.mxu0 %v1215
      %1225 = vmatprep.subr.bf16.mxu0 0
      %1226 = vmatpush1.bf16.msra.mxu0 0
      %1227 = vmatprep.subr.bf16.mxu0 0
      %1228 = vmatpush1.bf16.msra.mxu0 0
      %1229 = vmatprep.subr.bf16.mxu0 0
      %1230 = vmatpush1.bf16.msra.mxu0 0
      %1231 = vmatprep.subr.bf16.mxu0 0
      %1232 = vmatpush1.bf16.msra.mxu0 0
      %1233 = vmatprep.subr.bf16.mxu0 0
      %1234 = vmatpush1.bf16.msra.mxu0 0
      %1235 = vmatprep.subr.bf16.mxu0 0
      %1236 = vmatpush1.bf16.msra.mxu0 0
      %1237 = vmatprep.subr.bf16.mxu0 0
      %1238 = vmatpush1.bf16.msra.mxu0 0
      %1239 = vmatprep.subr.bf16.mxu0 0
      %1240 = vmatpush1.bf16.msra.mxu0 0
      %1241 = vmatprep.subr.bf16.mxu0 0
      %1242 = vmatpush1.bf16.msra.mxu0 0
      %1243 = vmatprep.subr.bf16.mxu0 0
      %1244 = vmatpush1.bf16.msra.mxu0 0
      %1245 = vmatprep.subr.bf16.mxu0 0
      %1246 = vmatpush1.bf16.msra.mxu0 0
      %1247 = vmatprep.subr.bf16.mxu0 0
      %1248 = vmatpush1.bf16.msra.mxu0 0
      %1249 = vmatprep.subr.bf16.mxu0 0
      %1250 = vmatpush1.bf16.msra.mxu0 0
      %1251 = vmatprep.subr.bf16.mxu0 0
      %1252 = vmatpush1.bf16.msra.mxu0 0
      %1253 = vmatprep.mubr.bf16.mxu0 0
      %1254 = vmatmul.mubr.bf16.gmra.mrb[0].mxu0 %v1219
      %v1255 = vpop.f32.mrb[0].mxu0
      %v1256 = vadd.f32 %v1205, %v1255
      %v1257 = vpop.f32.mrb[0].mxu0
      %v1258 = vpop.f32.mrb[0].mxu0
      %v1259 = vpop.f32.mrb[0].mxu0
      %1260 = vdwg.mxu0
      %v1261 = vpack.c.bf16 %v1256, %v1256
      %v1262 = vpack.c.bf16 %v1193, %v1193
      %v1263 = vsel %vm570, %v1262, 0
      %v1264 = vsel %vm570, %v1261, 0
      %v1266 = vsel %vm573, %v1263, 0
      %v1269 = vsel %vm573, %v1264, 0
      %1271 = vmatprep.subr.bf16.mxu0 0
      %1272 = vmatpush1.bf16.xpose.msra.mxu0 %v1269
      %1273 = vmatprep.subr.bf16.mxu0 0
      %1274 = vmatpush1.bf16.xpose.msra.mxu0 0
      %1275 = vmatprep.subr.bf16.mxu0 0
      %1276 = vmatpush1.bf16.xpose.msra.mxu0 0
      %1277 = vmatprep.subr.bf16.mxu0 0
      %1278 = vmatpush1.bf16.xpose.msra.mxu0 0
      %1279 = vmatprep.subr.bf16.mxu0 0
      %1280 = vmatpush1.bf16.xpose.msra.mxu0 0
      %1281 = vmatprep.subr.bf16.mxu0 0
      %1282 = vmatpush1.bf16.xpose.msra.mxu0 0
      %1283 = vmatprep.subr.bf16.mxu0 0
      %1284 = vmatpush1.bf16.xpose.msra.mxu0 0
      %1285 = vmatprep.subr.bf16.mxu0 0
      %1286 = vmatpush1.bf16.xpose.msra.mxu0 0
      %1287 = vmatprep.subr.bf16.mxu0 0
      %1288 = vmatpush1.bf16.xpose.msra.mxu0 0
      %1289 = vmatprep.subr.bf16.mxu0 0
      %1290 = vmatpush1.bf16.xpose.msra.mxu0 0
      %1291 = vmatprep.subr.bf16.mxu0 0
      %1292 = vmatpush1.bf16.xpose.msra.mxu0 0
      %1293 = vmatprep.subr.bf16.mxu0 0
      %1294 = vmatpush1.bf16.xpose.msra.mxu0 0
      %1295 = vmatprep.subr.bf16.mxu0 0
      %1296 = vmatpush1.bf16.xpose.msra.mxu0 0
      %1297 = vmatprep.subr.bf16.mxu0 0
      %1298 = vmatpush1.bf16.xpose.msra.mxu0 0
      %1299 = vmatprep.subr.bf16.mxu0 0
      %1300 = vmatpush1.bf16.xpose.msra.mxu0 0
      %1301 = vmatprep.subr.bf16.mxu0 0
      %1302 = vmatpush1.bf16.xpose.msra.mxu0 0
      %1303 = vmatprep.mubr.bf16.mxu0 0
      %1304 = vmatmul.mubr.bf16.gmra.mrb[0].mxu0 %v1266
      %v1305 = vpop.f32.mrb[0].mxu0
      %v1306 = vadd.f32 0.0, %v1305
      %v1307 = vpop.f32.mrb[0].mxu0
      %v1308 = vpop.f32.mrb[0].mxu0
      %v1309 = vpop.f32.mrb[0].mxu0
      %1310 = vdwg.mxu0
      %v1311 = vsel %vm620, %v1306, -inf
      %1312 = vmax.xlane.f32.xlu0 %v1311
      %v1313 = vpop.xlane.xlu0 %1312
      %v1314 = vsub.f32 %v1306, %v1313
      %v1315 = vmul.f32 %v1314, 1.442695
      %v1316 = vpow.pop %v1315
      %v1317 = vsel %vm620, %v1316, 0.0
      %1318 = vadd.xlane.f32.xlu0 %v1317
      %v1319 = vpop.xlane.xlu0 %1318
      %v1320 = vrcp.pop %v1319
      %v1321 = vmul.f32 %v1316, %v1320
      %v1322 = vpack.c.bf16 %v1321, %v1321
      %v1323 = vsel %vm635, %v1261, 0
      %v1324 = vsel %vm639, %v1262, 0
      %v1325 = vsel %vm639, %v1261, 0
      %v1327 = vsel %vm573, %v1324, 0
      %v1330 = vsel %vm573, %v1325, 0
      %1332 = vmatprep.subr.bf16.mxu0 0
      %1333 = vmatpush1.bf16.xpose.msra.mxu0 %v1330
      %1334 = vmatprep.subr.bf16.mxu0 0
      %1335 = vmatpush1.bf16.xpose.msra.mxu0 0
      %1336 = vmatprep.subr.bf16.mxu0 0
      %1337 = vmatpush1.bf16.xpose.msra.mxu0 0
      %1338 = vmatprep.subr.bf16.mxu0 0
      %1339 = vmatpush1.bf16.xpose.msra.mxu0 0
      %1340 = vmatprep.subr.bf16.mxu0 0
      %1341 = vmatpush1.bf16.xpose.msra.mxu0 0
      %1342 = vmatprep.subr.bf16.mxu0 0
      %1343 = vmatpush1.bf16.xpose.msra.mxu0 0
      %1344 = vmatprep.subr.bf16.mxu0 0
      %1345 = vmatpush1.bf16.xpose.msra.mxu0 0
      %1346 = vmatprep.subr.bf16.mxu0 0
      %1347 = vmatpush1.bf16.xpose.msra.mxu0 0
      %1348 = vmatprep.subr.bf16.mxu0 0
      %1349 = vmatpush1.bf16.xpose.msra.mxu0 0
      %1350 = vmatprep.subr.bf16.mxu0 0
      %1351 = vmatpush1.bf16.xpose.msra.mxu0 0
      %1352 = vmatprep.subr.bf16.mxu0 0
      %1353 = vmatpush1.bf16.xpose.msra.mxu0 0
      %1354 = vmatprep.subr.bf16.mxu0 0
      %1355 = vmatpush1.bf16.xpose.msra.mxu0 0
      %1356 = vmatprep.subr.bf16.mxu0 0
      %1357 = vmatpush1.bf16.xpose.msra.mxu0 0
      %1358 = vmatprep.subr.bf16.mxu0 0
      %1359 = vmatpush1.bf16.xpose.msra.mxu0 0
      %1360 = vmatprep.subr.bf16.mxu0 0
      %1361 = vmatpush1.bf16.xpose.msra.mxu0 0
      %1362 = vmatprep.subr.bf16.mxu0 0
      %1363 = vmatpush1.bf16.xpose.msra.mxu0 0
      %1364 = vmatprep.mubr.bf16.mxu0 0
      %1365 = vmatmul.mubr.bf16.gmra.mrb[0].mxu0 %v1327
      %v1366 = vpop.f32.mrb[0].mxu0
      %v1367 = vadd.f32 0.0, %v1366
      %v1368 = vpop.f32.mrb[0].mxu0
      %v1369 = vpop.f32.mrb[0].mxu0
      %v1370 = vpop.f32.mrb[0].mxu0
      %1371 = vdwg.mxu0
      %v1372 = vsel %vm620, %v1367, -inf
      %1373 = vmax.xlane.f32.xlu0 %v1372
      %v1374 = vpop.xlane.xlu0 %1373
      %v1375 = vsub.f32 %v1367, %v1374
      %v1376 = vmul.f32 %v1375, 1.442695
      %v1377 = vpow.pop %v1376
      %v1378 = vsel %vm620, %v1377, 0.0
      %1379 = vadd.xlane.f32.xlu0 %v1378
      %v1380 = vpop.xlane.xlu0 %1379
      %v1381 = vrcp.pop %v1380
      %v1382 = vmul.f32 %v1377, %v1381
      %v1383 = vpack.c.bf16 %v1382, %v1382
      %v1384 = vsel %vm702, %v1261, 0
      %v1386 = vsel %vm620, %v1383, 0
      %v1389 = vsel %vm707, %v1384, 0
      %1391 = vmatprep.subr.bf16.mxu0 0
      %1392 = vmatpush1.bf16.msra.mxu0 %v1389
      %1393 = vmatprep.subr.bf16.mxu0 0
      %1394 = vmatpush1.bf16.msra.mxu0 0
      %1395 = vmatprep.subr.bf16.mxu0 0
      %1396 = vmatpush1.bf16.msra.mxu0 0
      %1397 = vmatprep.subr.bf16.mxu0 0
      %1398 = vmatpush1.bf16.msra.mxu0 0
      %1399 = vmatprep.subr.bf16.mxu0 0
      %1400 = vmatpush1.bf16.msra.mxu0 0
      %1401 = vmatprep.subr.bf16.mxu0 0
      %1402 = vmatpush1.bf16.msra.mxu0 0
      %1403 = vmatprep.subr.bf16.mxu0 0
      %1404 = vmatpush1.bf16.msra.mxu0 0
      %1405 = vmatprep.subr.bf16.mxu0 0
      %1406 = vmatpush1.bf16.msra.mxu0 0
      %1407 = vmatprep.subr.bf16.mxu0 0
      %1408 = vmatpush1.bf16.msra.mxu0 0
      %1409 = vmatprep.subr.bf16.mxu0 0
      %1410 = vmatpush1.bf16.msra.mxu0 0
      %1411 = vmatprep.subr.bf16.mxu0 0
      %1412 = vmatpush1.bf16.msra.mxu0 0
      %1413 = vmatprep.subr.bf16.mxu0 0
      %1414 = vmatpush1.bf16.msra.mxu0 0
      %1415 = vmatprep.subr.bf16.mxu0 0
      %1416 = vmatpush1.bf16.msra.mxu0 0
      %1417 = vmatprep.subr.bf16.mxu0 0
      %1418 = vmatpush1.bf16.msra.mxu0 0
      %1419 = vmatprep.subr.bf16.mxu0 0
      %1420 = vmatpush1.bf16.msra.mxu0 0
      %1421 = vmatprep.subr.bf16.mxu0 0
      %1422 = vmatpush1.bf16.msra.mxu0 0
      %1423 = vmatprep.mubr.bf16.mxu0 0
      %1424 = vmatmul.mubr.bf16.gmra.mrb[0].mxu0 %v1386
      %v1425 = vpop.f32.mrb[0].mxu0
      %v1426 = vadd.f32 0.0, %v1425
      %v1427 = vpop.f32.mrb[0].mxu0
      %v1428 = vpop.f32.mrb[0].mxu0
      %v1429 = vpop.f32.mrb[0].mxu0
      %1430 = vdwg.mxu0
      %v1432 = vsel %vm620, %v1322, 0
      %v1435 = vsel %vm707, %v1323, 0
      %1437 = vmatprep.subr.bf16.mxu0 0
      %1438 = vmatpush1.bf16.msra.mxu0 %v1435
      %1439 = vmatprep.subr.bf16.mxu0 0
      %1440 = vmatpush1.bf16.msra.mxu0 0
      %1441 = vmatprep.subr.bf16.mxu0 0
      %1442 = vmatpush1.bf16.msra.mxu0 0
      %1443 = vmatprep.subr.bf16.mxu0 0
      %1444 = vmatpush1.bf16.msra.mxu0 0
      %1445 = vmatprep.subr.bf16.mxu0 0
      %1446 = vmatpush1.bf16.msra.mxu0 0
      %1447 = vmatprep.subr.bf16.mxu0 0
      %1448 = vmatpush1.bf16.msra.mxu0 0
      %1449 = vmatprep.subr.bf16.mxu0 0
      %1450 = vmatpush1.bf16.msra.mxu0 0
      %1451 = vmatprep.subr.bf16.mxu0 0
      %1452 = vmatpush1.bf16.msra.mxu0 0
      %1453 = vmatprep.subr.bf16.mxu0 0
      %1454 = vmatpush1.bf16.msra.mxu0 0
      %1455 = vmatprep.subr.bf16.mxu0 0
      %1456 = vmatpush1.bf16.msra.mxu0 0
      %1457 = vmatprep.subr.bf16.mxu0 0
      %1458 = vmatpush1.bf16.msra.mxu0 0
      %1459 = vmatprep.subr.bf16.mxu0 0
      %1460 = vmatpush1.bf16.msra.mxu0 0
      %1461 = vmatprep.subr.bf16.mxu0 0
      %1462 = vmatpush1.bf16.msra.mxu0 0
      %1463 = vmatprep.subr.bf16.mxu0 0
      %1464 = vmatpush1.bf16.msra.mxu0 0
      %1465 = vmatprep.subr.bf16.mxu0 0
      %1466 = vmatpush1.bf16.msra.mxu0 0
      %1467 = vmatprep.subr.bf16.mxu0 0
      %1468 = vmatpush1.bf16.msra.mxu0 0
      %1469 = vmatprep.mubr.bf16.mxu0 0
      %1470 = vmatmul.mubr.bf16.gmra.mrb[0].mxu0 %v1432
      %v1471 = vpop.f32.mrb[0].mxu0
      %v1472 = vadd.f32 %v1426, %v1471
      %v1473 = vpop.f32.mrb[0].mxu0
      %v1474 = vpop.f32.mrb[0].mxu0
      %v1475 = vpop.f32.mrb[0].mxu0
      %1476 = vdwg.mxu0
      %v1477 = vsel %vm799, %v1262, 0
      %v1478 = vsel %vm799, %v1261, 0
      %v1480 = vsel %vm573, %v1477, 0
      %v1483 = vsel %vm573, %v1478, 0
      %1485 = vmatprep.subr.bf16.mxu0 0
      %1486 = vmatpush1.bf16.xpose.msra.mxu0 %v1483
      %1487 = vmatprep.subr.bf16.mxu0 0
      %1488 = vmatpush1.bf16.xpose.msra.mxu0 0
      %1489 = vmatprep.subr.bf16.mxu0 0
      %1490 = vmatpush1.bf16.xpose.msra.mxu0 0
      %1491 = vmatprep.subr.bf16.mxu0 0
      %1492 = vmatpush1.bf16.xpose.msra.mxu0 0
      %1493 = vmatprep.subr.bf16.mxu0 0
      %1494 = vmatpush1.bf16.xpose.msra.mxu0 0
      %1495 = vmatprep.subr.bf16.mxu0 0
      %1496 = vmatpush1.bf16.xpose.msra.mxu0 0
      %1497 = vmatprep.subr.bf16.mxu0 0
      %1498 = vmatpush1.bf16.xpose.msra.mxu0 0
      %1499 = vmatprep.subr.bf16.mxu0 0
      %1500 = vmatpush1.bf16.xpose.msra.mxu0 0
      %1501 = vmatprep.subr.bf16.mxu0 0
      %1502 = vmatpush1.bf16.xpose.msra.mxu0 0
      %1503 = vmatprep.subr.bf16.mxu0 0
      %1504 = vmatpush1.bf16.xpose.msra.mxu0 0
      %1505 = vmatprep.subr.bf16.mxu0 0
      %1506 = vmatpush1.bf16.xpose.msra.mxu0 0
      %1507 = vmatprep.subr.bf16.mxu0 0
      %1508 = vmatpush1.bf16.xpose.msra.mxu0 0
      %1509 = vmatprep.subr.bf16.mxu0 0
      %1510 = vmatpush1.bf16.xpose.msra.mxu0 0
      %1511 = vmatprep.subr.bf16.mxu0 0
      %1512 = vmatpush1.bf16.xpose.msra.mxu0 0
      %1513 = vmatprep.subr.bf16.mxu0 0
      %1514 = vmatpush1.bf16.xpose.msra.mxu0 0
      %1515 = vmatprep.subr.bf16.mxu0 0
      %1516 = vmatpush1.bf16.xpose.msra.mxu0 0
      %1517 = vmatprep.mubr.bf16.mxu0 0
      %1518 = vmatmul.mubr.bf16.gmra.mrb[0].mxu0 %v1480
      %v1519 = vpop.f32.mrb[0].mxu0
      %v1520 = vadd.f32 0.0, %v1519
      %v1521 = vpop.f32.mrb[0].mxu0
      %v1522 = vpop.f32.mrb[0].mxu0
      %v1523 = vpop.f32.mrb[0].mxu0
      %1524 = vdwg.mxu0
      %v1525 = vsel %vm620, %v1520, -inf
      %1526 = vmax.xlane.f32.xlu0 %v1525
      %v1527 = vpop.xlane.xlu0 %1526
      %v1528 = vsub.f32 %v1520, %v1527
      %v1529 = vmul.f32 %v1528, 1.442695
      %v1530 = vpow.pop %v1529
      %v1531 = vsel %vm620, %v1530, 0.0
      %1532 = vadd.xlane.f32.xlu0 %v1531
      %v1533 = vpop.xlane.xlu0 %1532
      %v1534 = vrcp.pop %v1533
      %v1535 = vmul.f32 %v1530, %v1534
      %v1536 = vpack.c.bf16 %v1535, %v1535
      %v1537 = vsel %vm862, %v1261, 0
      %v1539 = vsel %vm620, %v1536, 0
      %v1542 = vsel %vm707, %v1537, 0
      %1544 = vmatprep.subr.bf16.mxu0 0
      %1545 = vmatpush1.bf16.msra.mxu0 %v1542
      %1546 = vmatprep.subr.bf16.mxu0 0
      %1547 = vmatpush1.bf16.msra.mxu0 0
      %1548 = vmatprep.subr.bf16.mxu0 0
      %1549 = vmatpush1.bf16.msra.mxu0 0
      %1550 = vmatprep.subr.bf16.mxu0 0
      %1551 = vmatpush1.bf16.msra.mxu0 0
      %1552 = vmatprep.subr.bf16.mxu0 0
      %1553 = vmatpush1.bf16.msra.mxu0 0
      %1554 = vmatprep.subr.bf16.mxu0 0
      %1555 = vmatpush1.bf16.msra.mxu0 0
      %1556 = vmatprep.subr.bf16.mxu0 0
      %1557 = vmatpush1.bf16.msra.mxu0 0
      %1558 = vmatprep.subr.bf16.mxu0 0
      %1559 = vmatpush1.bf16.msra.mxu0 0
      %1560 = vmatprep.subr.bf16.mxu0 0
      %1561 = vmatpush1.bf16.msra.mxu0 0
      %1562 = vmatprep.subr.bf16.mxu0 0
      %1563 = vmatpush1.bf16.msra.mxu0 0
      %1564 = vmatprep.subr.bf16.mxu0 0
      %1565 = vmatpush1.bf16.msra.mxu0 0
      %1566 = vmatprep.subr.bf16.mxu0 0
      %1567 = vmatpush1.bf16.msra.mxu0 0
      %1568 = vmatprep.subr.bf16.mxu0 0
      %1569 = vmatpush1.bf16.msra.mxu0 0
      %1570 = vmatprep.subr.bf16.mxu0 0
      %1571 = vmatpush1.bf16.msra.mxu0 0
      %1572 = vmatprep.subr.bf16.mxu0 0
      %1573 = vmatpush1.bf16.msra.mxu0 0
      %1574 = vmatprep.subr.bf16.mxu0 0
      %1575 = vmatpush1.bf16.msra.mxu0 0
      %1576 = vmatprep.mubr.bf16.mxu0 0
      %1577 = vmatmul.mubr.bf16.gmra.mrb[0].mxu0 %v1539
      %v1578 = vpop.f32.mrb[0].mxu0
      %v1579 = vadd.f32 0.0, %v1578
      %v1580 = vpop.f32.mrb[0].mxu0
      %v1581 = vpop.f32.mrb[0].mxu0
      %v1582 = vpop.f32.mrb[0].mxu0
      %1583 = vdwg.mxu0
      %v1584 = vadd.f32 %v1472, %v1579
      %v1585 = vsel %vm913, %v1262, 0
      %v1586 = vsel %vm913, %v1261, 0
      %v1588 = vsel %vm573, %v1585, 0
      %v1591 = vsel %vm573, %v1586, 0
      %1593 = vmatprep.subr.bf16.mxu0 0
      %1594 = vmatpush1.bf16.xpose.msra.mxu0 %v1591
      %1595 = vmatprep.subr.bf16.mxu0 0
      %1596 = vmatpush1.bf16.xpose.msra.mxu0 0
      %1597 = vmatprep.subr.bf16.mxu0 0
      %1598 = vmatpush1.bf16.xpose.msra.mxu0 0
      %1599 = vmatprep.subr.bf16.mxu0 0
      %1600 = vmatpush1.bf16.xpose.msra.mxu0 0
      %1601 = vmatprep.subr.bf16.mxu0 0
      %1602 = vmatpush1.bf16.xpose.msra.mxu0 0
      %1603 = vmatprep.subr.bf16.mxu0 0
      %1604 = vmatpush1.bf16.xpose.msra.mxu0 0
      %1605 = vmatprep.subr.bf16.mxu0 0
      %1606 = vmatpush1.bf16.xpose.msra.mxu0 0
      %1607 = vmatprep.subr.bf16.mxu0 0
      %1608 = vmatpush1.bf16.xpose.msra.mxu0 0
      %1609 = vmatprep.subr.bf16.mxu0 0
      %1610 = vmatpush1.bf16.xpose.msra.mxu0 0
      %1611 = vmatprep.subr.bf16.mxu0 0
      %1612 = vmatpush1.bf16.xpose.msra.mxu0 0
      %1613 = vmatprep.subr.bf16.mxu0 0
      %1614 = vmatpush1.bf16.xpose.msra.mxu0 0
      %1615 = vmatprep.subr.bf16.mxu0 0
      %1616 = vmatpush1.bf16.xpose.msra.mxu0 0
      %1617 = vmatprep.subr.bf16.mxu0 0
      %1618 = vmatpush1.bf16.xpose.msra.mxu0 0
      %1619 = vmatprep.subr.bf16.mxu0 0
      %1620 = vmatpush1.bf16.xpose.msra.mxu0 0
      %1621 = vmatprep.subr.bf16.mxu0 0
      %1622 = vmatpush1.bf16.xpose.msra.mxu0 0
      %1623 = vmatprep.subr.bf16.mxu0 0
      %1624 = vmatpush1.bf16.xpose.msra.mxu0 0
      %1625 = vmatprep.mubr.bf16.mxu0 0
      %1626 = vmatmul.mubr.bf16.gmra.mrb[0].mxu0 %v1588
      %v1627 = vpop.f32.mrb[0].mxu0
      %v1628 = vadd.f32 0.0, %v1627
      %v1629 = vpop.f32.mrb[0].mxu0
      %v1630 = vpop.f32.mrb[0].mxu0
      %v1631 = vpop.f32.mrb[0].mxu0
      %1632 = vdwg.mxu0
      %v1633 = vsel %vm620, %v1628, -inf
      %1634 = vmax.xlane.f32.xlu0 %v1633
      %v1635 = vpop.xlane.xlu0 %1634
      %v1636 = vsub.f32 %v1628, %v1635
      %v1637 = vmul.f32 %v1636, 1.442695
      %v1638 = vpow.pop %v1637
      %v1639 = vsel %vm620, %v1638, 0.0
      %1640 = vadd.xlane.f32.xlu0 %v1639
      %v1641 = vpop.xlane.xlu0 %1640
      %v1642 = vrcp.pop %v1641
      %v1643 = vmul.f32 %v1638, %v1642
      %v1644 = vpack.c.bf16 %v1643, %v1643
      %v1645 = vsel %vm976, %v1261, 0
      %v1647 = vsel %vm620, %v1644, 0
      %v1650 = vsel %vm707, %v1645, 0
      %1652 = vmatprep.subr.bf16.mxu0 0
      %1653 = vmatpush1.bf16.msra.mxu0 %v1650
      %1654 = vmatprep.subr.bf16.mxu0 0
      %1655 = vmatpush1.bf16.msra.mxu0 0
      %1656 = vmatprep.subr.bf16.mxu0 0
      %1657 = vmatpush1.bf16.msra.mxu0 0
      %1658 = vmatprep.subr.bf16.mxu0 0
      %1659 = vmatpush1.bf16.msra.mxu0 0
      %1660 = vmatprep.subr.bf16.mxu0 0
      %1661 = vmatpush1.bf16.msra.mxu0 0
      %1662 = vmatprep.subr.bf16.mxu0 0
      %1663 = vmatpush1.bf16.msra.mxu0 0
      %1664 = vmatprep.subr.bf16.mxu0 0
      %1665 = vmatpush1.bf16.msra.mxu0 0
      %1666 = vmatprep.subr.bf16.mxu0 0
      %1667 = vmatpush1.bf16.msra.mxu0 0
      %1668 = vmatprep.subr.bf16.mxu0 0
      %1669 = vmatpush1.bf16.msra.mxu0 0
      %1670 = vmatprep.subr.bf16.mxu0 0
      %1671 = vmatpush1.bf16.msra.mxu0 0
      %1672 = vmatprep.subr.bf16.mxu0 0
      %1673 = vmatpush1.bf16.msra.mxu0 0
      %1674 = vmatprep.subr.bf16.mxu0 0
      %1675 = vmatpush1.bf16.msra.mxu0 0
      %1676 = vmatprep.subr.bf16.mxu0 0
      %1677 = vmatpush1.bf16.msra.mxu0 0
      %1678 = vmatprep.subr.bf16.mxu0 0
      %1679 = vmatpush1.bf16.msra.mxu0 0
      %1680 = vmatprep.subr.bf16.mxu0 0
      %1681 = vmatpush1.bf16.msra.mxu0 0
      %1682 = vmatprep.subr.bf16.mxu0 0
      %1683 = vmatpush1.bf16.msra.mxu0 0
      %1684 = vmatprep.mubr.bf16.mxu0 0
      %1685 = vmatmul.mubr.bf16.gmra.mrb[0].mxu0 %v1647
      %v1686 = vpop.f32.mrb[0].mxu0
      %v1687 = vadd.f32 0.0, %v1686
      %v1688 = vpop.f32.mrb[0].mxu0
      %v1689 = vpop.f32.mrb[0].mxu0
      %v1690 = vpop.f32.mrb[0].mxu0
      %1691 = vdwg.mxu0
      %v1692 = vadd.f32 %v1584, %v1687
      %v1693 = vpack.c.bf16 %v1692, %v1692
      %v1694 = vld [vmem:[%s7] sm:$0xf]
      %v1695 = vld [vmem:[%s7 + $0x4] sm:$0xf]
      %v1696 = vld [vmem:[%s7 + $0x8] sm:$0xf]
      %v1697 = vld [vmem:[%s7 + $0xc] sm:$0xf]
      %v1698 = vld [vmem:[%s7 + $0x10] sm:$0xf]
      %v1699 = vld [vmem:[%s7 + $0x14] sm:$0xf]
      %v1700 = vld [vmem:[%s7 + $0x18] sm:$0xf]
      %v1701 = vld [vmem:[%s7 + $0x1c] sm:$0xf]
      %v1702 = vlaneseq
      %v1703 = vshrl.u32 %v1702, 7
      %v1704 = vsub.s32 0, %v1703
      %v1705 = vrot.slane %v407, %v1704
      %v1714 = vunpack.c.l.b16 %v1694
      %v1715 = vunpack.c.l.b16 %v1695
      %v1716 = vunpack.c.l.b16 %v1696
      %v1717 = vunpack.c.l.b16 %v1697
      %v1718 = vunpack.c.l.b16 %v1698
      %v1719 = vunpack.c.l.b16 %v1699
      %v1720 = vunpack.c.l.b16 %v1700
      %v1721 = vunpack.c.l.b16 %v1701
      %v1722 = vpack.c.b16 %v1715, %v1714
      %v1723 = vpack.c.b16 %v1717, %v1716
      %v1724 = vpack.c.b16 %v1719, %v1718
      %v1725 = vpack.c.b16 %v1721, %v1720
      %v1731 = vsel %vm573, %v1693, 0
      %1733 = vmatprep.subr.bf16.mxu0 0
      %1734 = vmatpush1.bf16.msra.mxu0 %v1722
      %1735 = vmatprep.subr.bf16.mxu0 0
      %1736 = vmatpush1.bf16.msra.mxu0 %v1723
      %1737 = vmatprep.subr.bf16.mxu0 0
      %1738 = vmatpush1.bf16.msra.mxu0 %v1724
      %1739 = vmatprep.subr.bf16.mxu0 0
      %1740 = vmatpush1.bf16.msra.mxu0 %v1725
      %1741 = vmatprep.subr.bf16.mxu0 0
      %1742 = vmatpush1.bf16.msra.mxu0 0
      %1743 = vmatprep.subr.bf16.mxu0 0
      %1744 = vmatpush1.bf16.msra.mxu0 0
      %1745 = vmatprep.subr.bf16.mxu0 0
      %1746 = vmatpush1.bf16.msra.mxu0 0
      %1747 = vmatprep.subr.bf16.mxu0 0
      %1748 = vmatpush1.bf16.msra.mxu0 0
      %1749 = vmatprep.subr.bf16.mxu0 0
      %1750 = vmatpush1.bf16.msra.mxu0 0
      %1751 = vmatprep.subr.bf16.mxu0 0
      %1752 = vmatpush1.bf16.msra.mxu0 0
      %1753 = vmatprep.subr.bf16.mxu0 0
      %1754 = vmatpush1.bf16.msra.mxu0 0
      %1755 = vmatprep.subr.bf16.mxu0 0
      %1756 = vmatpush1.bf16.msra.mxu0 0
      %1757 = vmatprep.subr.bf16.mxu0 0
      %1758 = vmatpush1.bf16.msra.mxu0 0
      %1759 = vmatprep.subr.bf16.mxu0 0
      %1760 = vmatpush1.bf16.msra.mxu0 0
      %1761 = vmatprep.subr.bf16.mxu0 0
      %1762 = vmatpush1.bf16.msra.mxu0 0
      %1763 = vmatprep.subr.bf16.mxu0 0
      %1764 = vmatpush1.bf16.msra.mxu0 0
      %1765 = vmatprep.mubr.bf16.mxu0 0
      %1766 = vmatmul.mubr.bf16.gmra.mrb[0].mxu0 %v1731
      %v1767 = vpop.f32.mrb[0].mxu0
      %v1768 = vadd.f32 %v1705, %v1767
      %v1769 = vpop.f32.mrb[0].mxu0
      %v1770 = vpop.f32.mrb[0].mxu0
      %v1771 = vpop.f32.mrb[0].mxu0
      %1772 = vdwg.mxu0
      %v1773 = vadd.f32 %v1131, %v1768
      %v1774 = vsel %vm462, %v1773, 0.0
      %1775 = vadd.xlane.f32.xlu0 %v1774
      %v1776 = vpop.xlane.xlu0 %1775
      %v1777 = vmul.f32 %v1776, %v1109
      %v1778 = vmul.f32 %v1773, %v1773
      %v1779 = vsel %vm462, %v1778, 0.0
      %1780 = vadd.xlane.f32.xlu0 %v1779
      %v1781 = vpop.xlane.xlu0 %1780
      %v1782 = vmul.f32 %v1781, %v1109
      %v1783 = vmul.f32 %v1777, %v1777
      %v1784 = vsub.f32 %v1782, %v1783
      %v1785 = vadd.f32 %v1784, 1e-05
      %v1786 = vrsqrt.pop %v1785
      %v1787 = vsub.f32 %v1773, %v1777
      %v1788 = vmul.f32 %v1787, %v1786
      %v1789 = vlaneseq
      %v1790 = vshrl.u32 %v1789, 7
      %v1791 = vsub.s32 0, %v1790
      %v1792 = vrot.slane %v408, %v1791
      %v1793 = vmul.f32 %v1788, %v1792
      %v1794 = vlaneseq
      %v1795 = vshrl.u32 %v1794, 7
      %v1796 = vsub.s32 0, %v1795
      %v1797 = vrot.slane %v409, %v1796
      %v1798 = vadd.f32 %v1793, %v1797
      %v1799 = vpack.c.bf16 %v1798, %v1798
      %v1800 = vld [vmem:[%s8] sm:$0xf]
      %v1801 = vld [vmem:[%s8 + $0x4] sm:$0xf]
      %v1802 = vld [vmem:[%s8 + $0x8] sm:$0xf]
      %v1803 = vld [vmem:[%s8 + $0xc] sm:$0xf]
      %v1804 = vlaneseq
      %v1805 = vshrl.u32 %v1804, 7
      %v1806 = vsub.s32 0, %v1805
      %v1807 = vrot.slane %v410, %v1806
      %v1812 = vunpack.c.l.b16 %v1800
      %v1813 = vunpack.c.l.b16 %v1801
      %v1814 = vunpack.c.l.b16 %v1802
      %v1815 = vunpack.c.l.b16 %v1803
      %v1816 = vpack.c.b16 %v1813, %v1812
      %v1817 = vpack.c.b16 %v1815, %v1814
      %v1821 = vsel %vm462, %v1799, 0
      %1823 = vmatprep.subr.bf16.mxu0 0
      %1824 = vmatpush1.bf16.msra.mxu0 %v1816
      %1825 = vmatprep.subr.bf16.mxu0 0
      %1826 = vmatpush1.bf16.msra.mxu0 %v1817
      %1827 = vmatprep.subr.bf16.mxu0 0
      %1828 = vmatpush1.bf16.msra.mxu0 0
      %1829 = vmatprep.subr.bf16.mxu0 0
      %1830 = vmatpush1.bf16.msra.mxu0 0
      %1831 = vmatprep.subr.bf16.mxu0 0
      %1832 = vmatpush1.bf16.msra.mxu0 0
      %1833 = vmatprep.subr.bf16.mxu0 0
      %1834 = vmatpush1.bf16.msra.mxu0 0
      %1835 = vmatprep.subr.bf16.mxu0 0
      %1836 = vmatpush1.bf16.msra.mxu0 0
      %1837 = vmatprep.subr.bf16.mxu0 0
      %1838 = vmatpush1.bf16.msra.mxu0 0
      %1839 = vmatprep.subr.bf16.mxu0 0
      %1840 = vmatpush1.bf16.msra.mxu0 0
      %1841 = vmatprep.subr.bf16.mxu0 0
      %1842 = vmatpush1.bf16.msra.mxu0 0
      %1843 = vmatprep.subr.bf16.mxu0 0
      %1844 = vmatpush1.bf16.msra.mxu0 0
      %1845 = vmatprep.subr.bf16.mxu0 0
      %1846 = vmatpush1.bf16.msra.mxu0 0
      %1847 = vmatprep.subr.bf16.mxu0 0
      %1848 = vmatpush1.bf16.msra.mxu0 0
      %1849 = vmatprep.subr.bf16.mxu0 0
      %1850 = vmatpush1.bf16.msra.mxu0 0
      %1851 = vmatprep.subr.bf16.mxu0 0
      %1852 = vmatpush1.bf16.msra.mxu0 0
      %1853 = vmatprep.subr.bf16.mxu0 0
      %1854 = vmatpush1.bf16.msra.mxu0 0
      %1855 = vmatprep.mubr.bf16.mxu0 0
      %1856 = vmatmul.mubr.bf16.gmra.mrb[0].mxu0 %v1821
      %v1857 = vpop.f32.mrb[0].mxu0
      %v1858 = vadd.f32 %v1807, %v1857
      %v1859 = vpop.f32.mrb[0].mxu0
      %v1860 = vpop.f32.mrb[0].mxu0
      %v1861 = vpop.f32.mrb[0].mxu0
      %1862 = vdwg.mxu0
      %vm1863 = vcmp.ge.f32.partialorder %v1858, 0.0
      %v1864 = vmul.f32 %v1858, 0.01
      %v1865 = vsel %vm1863, %v1858, %v1864
      %v1866 = vpack.c.bf16 %v1865, %v1865
      %v1867 = vld [vmem:[%s9] sm:$0xf]
      %v1868 = vld [vmem:[%s9 + $0x4] sm:$0xf]
      %v1869 = vld [vmem:[%s9 + $0x8] sm:$0xf]
      %v1870 = vld [vmem:[%s9 + $0xc] sm:$0xf]
      %v1871 = vld [vmem:[%s9 + $0x10] sm:$0xf]
      %v1872 = vld [vmem:[%s9 + $0x14] sm:$0xf]
      %v1873 = vld [vmem:[%s9 + $0x18] sm:$0xf]
      %v1874 = vld [vmem:[%s9 + $0x1c] sm:$0xf]
      %v1875 = vlaneseq
      %v1876 = vshrl.u32 %v1875, 7
      %v1877 = vsub.s32 0, %v1876
      %v1878 = vrot.slane %v411, %v1877
      %v1887 = vunpack.c.l.b16 %v1867
      %v1888 = vunpack.c.l.b16 %v1868
      %v1889 = vunpack.c.l.b16 %v1869
      %v1890 = vunpack.c.l.b16 %v1870
      %v1891 = vunpack.c.l.b16 %v1871
      %v1892 = vunpack.c.l.b16 %v1872
      %v1893 = vunpack.c.l.b16 %v1873
      %v1894 = vunpack.c.l.b16 %v1874
      %v1895 = vpack.c.b16 %v1888, %v1887
      %v1896 = vpack.c.b16 %v1890, %v1889
      %v1897 = vpack.c.b16 %v1892, %v1891
      %v1898 = vpack.c.b16 %v1894, %v1893
      %v1904 = vsel %vm573, %v1866, 0
      %1906 = vmatprep.subr.bf16.mxu0 0
      %1907 = vmatpush1.bf16.msra.mxu0 %v1895
      %1908 = vmatprep.subr.bf16.mxu0 0
      %1909 = vmatpush1.bf16.msra.mxu0 %v1896
      %1910 = vmatprep.subr.bf16.mxu0 0
      %1911 = vmatpush1.bf16.msra.mxu0 %v1897
      %1912 = vmatprep.subr.bf16.mxu0 0
      %1913 = vmatpush1.bf16.msra.mxu0 %v1898
      %1914 = vmatprep.subr.bf16.mxu0 0
      %1915 = vmatpush1.bf16.msra.mxu0 0
      %1916 = vmatprep.subr.bf16.mxu0 0
      %1917 = vmatpush1.bf16.msra.mxu0 0
      %1918 = vmatprep.subr.bf16.mxu0 0
      %1919 = vmatpush1.bf16.msra.mxu0 0
      %1920 = vmatprep.subr.bf16.mxu0 0
      %1921 = vmatpush1.bf16.msra.mxu0 0
      %1922 = vmatprep.subr.bf16.mxu0 0
      %1923 = vmatpush1.bf16.msra.mxu0 0
      %1924 = vmatprep.subr.bf16.mxu0 0
      %1925 = vmatpush1.bf16.msra.mxu0 0
      %1926 = vmatprep.subr.bf16.mxu0 0
      %1927 = vmatpush1.bf16.msra.mxu0 0
      %1928 = vmatprep.subr.bf16.mxu0 0
      %1929 = vmatpush1.bf16.msra.mxu0 0
      %1930 = vmatprep.subr.bf16.mxu0 0
      %1931 = vmatpush1.bf16.msra.mxu0 0
      %1932 = vmatprep.subr.bf16.mxu0 0
      %1933 = vmatpush1.bf16.msra.mxu0 0
      %1934 = vmatprep.subr.bf16.mxu0 0
      %1935 = vmatpush1.bf16.msra.mxu0 0
      %1936 = vmatprep.subr.bf16.mxu0 0
      %1937 = vmatpush1.bf16.msra.mxu0 0
      %1938 = vmatprep.mubr.bf16.mxu0 0
      %1939 = vmatmul.mubr.bf16.gmra.mrb[0].mxu0 %v1904
      %v1940 = vpop.f32.mrb[0].mxu0
      %v1941 = vadd.f32 %v1878, %v1940
      %v1942 = vpop.f32.mrb[0].mxu0
      %v1943 = vpop.f32.mrb[0].mxu0
      %v1944 = vpop.f32.mrb[0].mxu0
      %1945 = vdwg.mxu0
      %v1946 = vmax.f32 %v1941, 0.0
      %v1947 = vadd.f32 %v1798, %v1946
      %v1948 = vsel %vm462, %v1947, 0.0
      %1949 = vadd.xlane.f32.xlu0 %v1948
      %v1950 = vpop.xlane.xlu0 %1949
      %v1951 = vmul.f32 %v1950, %v1109
      %v1952 = vmul.f32 %v1947, %v1947
      %v1953 = vsel %vm462, %v1952, 0.0
      %1954 = vadd.xlane.f32.xlu0 %v1953
      %v1955 = vpop.xlane.xlu0 %1954
      %v1956 = vmul.f32 %v1955, %v1109
      %v1957 = vmul.f32 %v1951, %v1951
      %v1958 = vsub.f32 %v1956, %v1957
      %v1959 = vadd.f32 %v1958, 1e-05
      %v1960 = vrsqrt.pop %v1959
      %v1961 = vsub.f32 %v1947, %v1951
      %v1962 = vmul.f32 %v1961, %v1960
      %v1963 = vlaneseq
      %v1964 = vshrl.u32 %v1963, 7
      %v1965 = vsub.s32 0, %v1964
      %v1966 = vrot.slane %v412, %v1965
      %v1967 = vmul.f32 %v1962, %v1966
      %v1968 = vlaneseq
      %v1969 = vshrl.u32 %v1968, 7
      %v1970 = vsub.s32 0, %v1969
      %v1971 = vrot.slane %v413, %v1970
      %v1972 = vadd.f32 %v1967, %v1971
      %1973 = vst.msk [vmem:[%s398] sm:$0xff] %vm462, %v1972
      %p1974 = scmp.lt.s32.totalorder %s22, 1
      %s1975 = scalar_select %p1974, %s22, 1
      %s1976 = smul.addr %s1975, 8
      %s1977 = scalar_lea.vmem %s11, %s1976
      // Predicated region
      $region65: #{decoder_layer.1} parent=63 // pred_check
        %p1978 = pneg %p281
      $region66: #{decoder_layer.1} parent=63 // pred_check_branch
        %1980 = sbr.rel (%p1978) target = $region68
      $region67: #{decoder_layer.1} parent=63 // pred_region
        _
      $region68: #{decoder_layer.1} parent=63 // pred_fallthru
        _
    $region64: #{decoder_layer.1} parent=5 // pred_fallthru
      _
    %p1981 = scmp.le.s32.totalorder 2, %s17
    // Predicated region
    $region69: #{decoder_layer.1} parent=5 // pred_check
      %p1982 = pneg %p1981
    $region70: #{decoder_layer.1} parent=5 // pred_check_branch
      %1984 = sbr.rel (%p1982) target = $region72
    $region71: #{decoder_layer.1} parent=5 // pred_region
      %s1985 = ssub.s32 %s17, 2
      // Predicated region
      $region73: #{decoder_layer.1} parent=71 // pred_check
        %p1986 = pneg %p287
      $region74: #{decoder_layer.1} parent=71 // pred_check_branch
        %1988 = sbr.rel (%p1986) target = $region76
      $region75: #{decoder_layer.1} parent=71 // pred_region
        %p1989 = scmp.lt.s32.totalorder %s23, 1
        %s1990 = scalar_select %p1989, %s23, 1
        %s1991 = smul.addr %s1990, 8
        %s1992 = scalar_lea.vmem %s11, %s1991
      $region76: #{decoder_layer.1} parent=71 // pred_fallthru
        _
    $region72: #{decoder_layer.1} parent=5 // pred_fallthru
      _
  $region6: #{decoder_layer.1} parent=0 // loop_footer
    %s21 = sadd.s32 1, %s17
  $region7: #{decoder_layer.1} parent=0 // loop_footer_branch
    %16 = sbr.rel target = $region3
  $region8: #{decoder_layer.1} parent=0 // loop_exit
    _

</llo_original>
